<compile_context>
chip_gen: v5e
topology: v5e:2x2
jax: 0.10.0
libtpu: 0.0.40
codegen_flags: <defaults>
</compile_context>

<pallas_src>
import numpy as np
import jax
import jax.numpy as jnp
from jax import lax
from jax.experimental import pallas as pl
from jax.experimental.pallas import tpu as pltpu

# Problem configuration (gate_channels=C, reduction_ratio=16 default,
# pool_types=['avg','max'] default, no_spatial=False)
N, C, H, W = 2, 128, 16, 16
R = 16                  # reduction_ratio
CH = C // R             # MLP hidden width
K = 7                   # spatial conv kernel size
PAD = (K - 1) // 2
HW = H * W
BN_EPS = 1e-5

LANE = 128              # process HW in 128-lane chunks (lane-dense stores)


def dual_gate_kernel(x_ref, p_ref, mt_ref, o_ref, pcat_scr):
    # x_ref : (Nb, C, HW)  activations for Nb batch elements (f32)
    # p_ref : (CH + C, C)  packed MLP params:
    #           rows [0:CH]                    = W1 (CH, C)
    #           rows [CH:CH+C], cols [0:CH]    = W2 (C, CH)
    #           rows [CH:CH+C], col  CH        = b2 (C,)
    #           rows [CH:2*CH], col  CH+1      = b1 (CH,)
    # mt_ref: (2*HW, HW)   Toeplitz matrix of the 7x7 conv (BN folded), bf16
    # o_ref : (Nb, C, HW)  gated output
    # pcat  : (Nb, 2*HW)   f32 scratch holding [max_c | mean_c] per batch element
    nb = x_ref.shape[0]
    c = x_ref.shape[1]
    hw = x_ref.shape[2]
    nch = hw // LANE

    # ---- ChannelGate pooling: spatial avg & max over HW (lane reductions),
    #      packed as the 2*Nb columns of one (C, 2*Nb) matrix (avg cols | max cols).
    col = lax.broadcasted_iota(jnp.int32, (c, 2 * nb), 1)
    pooled = jnp.zeros((c, 2 * nb), jnp.float32)
    for b in range(nb):
        acc_sum = jnp.zeros((c, 1), jnp.float32)
        acc_max = jnp.full((c, 1), -jnp.inf, jnp.float32)
        for t in range(nch):
            lo = t * LANE
            xb = x_ref[b, :, lo:lo + LANE]                       # (C, 128)
            acc_sum = acc_sum + jnp.sum(xb, axis=1, keepdims=True)
            acc_max = jnp.maximum(acc_max, jnp.max(xb, axis=1, keepdims=True))
        pooled = jnp.where(col == b, acc_sum * (1.0 / hw), pooled)
        pooled = jnp.where(col == nb + b, acc_max, pooled)

    # ---- Shared MLP on all 2*Nb pooled vectors at once (2 MXU matmuls total)
    w1 = p_ref[0:CH, :]                                          # (CH, C)
    w2 = p_ref[CH:CH + c, 0:CH]                                  # (C, CH)
    b2 = p_ref[CH:CH + c, CH:CH + 1]                             # (C, 1)
    b1 = p_ref[CH:2 * CH, CH + 1:CH + 2]                         # (CH, 1)
    h = jnp.maximum(
        jnp.dot(w1, pooled, preferred_element_type=jnp.float32) + b1, 0.0)
    att = jnp.dot(w2, h, preferred_element_type=jnp.float32) + b2   # (C, 2*Nb)
    # sum avg+max branches, sigmoid -> per-channel scale (one column per batch elem)
    ch_scale = jax.nn.sigmoid(att[:, 0:nb] + att[:, nb:2 * nb])     # (C, Nb)

    # ---- SpatialGate ChannelPool of the channel-gated activations:
    #      max & mean over C (sublane reductions), laid out [max | mean] per row.
    for b in range(nb):
        csc = ch_scale[:, b:b + 1]                               # (C, 1)
        for t in range(nch):
            lo = t * LANE
            yb = x_ref[b, :, lo:lo + LANE] * csc                 # (C, 128)
            pcat_scr[b:b + 1, lo:lo + LANE] = jnp.max(yb, axis=0, keepdims=True)
            pcat_scr[b:b + 1, hw + lo:hw + lo + LANE] = (
                jnp.mean(yb, axis=0, keepdims=True))

    # ---- 7x7 "same" conv (+ folded BN) as one batched MXU matmul (M = Nb),
    #      bf16 operands, f32 accumulation; sigmoid map stays live in vregs.
    conv = jnp.dot(pcat_scr[...].astype(jnp.bfloat16), mt_ref[...],
                   preferred_element_type=jnp.float32)           # (Nb, HW)
    sig = jax.nn.sigmoid(conv)

    # ---- Apply both gates; lane-dense 128-wide unmasked output stores
    for b in range(nb):
        csc = ch_scale[:, b:b + 1]                               # (C, 1)
        for t in range(nch):
            lo = t * LANE
            xb = x_ref[b, :, lo:lo + LANE]                       # (C, 128)
            sg = sig[b:b + 1, lo:lo + LANE]                      # (1, 128)
            o_ref[b, :, lo:lo + LANE] = xb * csc * sg


def _default_grid_steps(n):
    """Use a 2-wide 'parallel' grid only on chips with 2 TensorCores (v7x+);
    otherwise collapse the grid so the conv matmul M-dim is batched over all N."""
    kind = ""
    try:
        kind = jax.devices()[0].device_kind.lower()
    except Exception:
        pass
    if n % 2 == 0 and "v7" in kind:
        return 2
    return 1


def build_conv_matrix(conv_w_eff, h, w):
    """(2*H*W, H*W) matrix M so that conv_flat = [max_flat | mean_flat] @ M,
    implementing Conv2d(2, 1, 7, padding=3, bias=False) (cross-correlation,
    zero padding) with the eval-mode BN scale already folded into conv_w_eff."""
    hw = h * w
    m = np.zeros((2 * hw, hw), np.float32)
    for cc in range(2):
        for i in range(h):
            for j in range(w):
                o = i * w + j
                for dy in range(K):
                    for dx in range(K):
                        r = i + dy - PAD
                        s = j + dx - PAD
                        if 0 <= r < h and 0 <= s < w:
                            m[cc * hw + r * w + s, o] = conv_w_eff[cc, dy, dx]
    return m


def pack_mlp_params(w1, b1, w2, b2):
    """Pack the ChannelGate MLP params into one lane-dense (CH+C, C) f32 buffer."""
    c = w1.shape[1]
    p = np.zeros((CH + c, c), np.float32)
    p[0:CH, :] = np.asarray(w1)
    p[CH:CH + c, 0:CH] = np.asarray(w2)
    p[CH:CH + c, CH] = np.asarray(b2)
    p[CH:2 * CH, CH + 1] = np.asarray(b1)
    return jnp.asarray(p)


def dual_gate(x, params, mt, *, steps=None):
    n, c, h, w = x.shape
    hw = h * w
    assert hw % LANE == 0 and c % 8 == 0
    if steps is None:
        steps = _default_grid_steps(n)
    assert n % steps == 0
    nb = n // steps
    x3 = x.reshape(n, c, hw)          # pure reshape (NCHW contiguous) — no copy

    out = pl.pallas_call(
        dual_gate_kernel,
        out_shape=jax.ShapeDtypeStruct((n, c, hw), jnp.float32),
        grid=(steps,),
        in_specs=[
            pl.BlockSpec((nb, c, hw), lambda i: (i, 0, 0)),       # activations
            pl.BlockSpec((CH + c, c), lambda i: (0, 0)),          # packed MLP params
            pl.BlockSpec((2 * hw, hw), lambda i: (0, 0)),         # conv Toeplitz (bf16)
        ],
        out_specs=pl.BlockSpec((nb, c, hw), lambda i: (i, 0, 0)),
        scratch_shapes=[pltpu.VMEM((nb, 2 * hw), jnp.float32)],   # [max | mean]
        compiler_params=pltpu.CompilerParams(
            dimension_semantics=("parallel",)),
    )(x3, params, mt)
    return out.reshape(n, c, h, w)


def dual_gate_reference(x, w1, b1, w2, b2, conv_w_np):
    # Pure-JAX reference mirroring the PyTorch forward (NCHW, f32 throughout).
    n, c, h, w = x.shape
    avg = jnp.mean(x, axis=(2, 3))                 # (N, C)
    mx = jnp.max(x, axis=(2, 3))                   # (N, C)

    def mlp(v):
        return jnp.maximum(v @ w1.T + b1, 0.0) @ w2.T + b2

    scale = jax.nn.sigmoid(mlp(avg) + mlp(mx))
    xg = x * scale[:, :, None, None]

    pool = jnp.stack([jnp.max(xg, axis=1), jnp.mean(xg, axis=1)], axis=1)
    pp = jnp.pad(pool, ((0, 0), (0, 0), (PAD, PAD), (PAD, PAD)))
    conv = jnp.zeros((n, h, w), jnp.float32)
    for cc in range(2):
        for dy in range(K):
            for dx in range(K):
                conv = conv + float(conv_w_np[cc, dy, dx]) * pp[:, cc, dy:dy + h, dx:dx + w]
    return xg * jax.nn.sigmoid(conv)[:, None, :, :]


if __name__ == "__main__":
    key = jax.random.PRNGKey(0)
    kx, k1, k2, k3, k4, k5 = jax.random.split(key, 6)

    x = jax.random.normal(kx, (N, C, H, W), jnp.float32)

    # ChannelGate MLP parameters in PyTorch Linear layout: weight (out, in), bias (out,).
    w1 = jax.random.normal(k1, (CH, C), jnp.float32) * 0.1
    b1 = jax.random.normal(k2, (CH,), jnp.float32) * 0.1
    w2 = jax.random.normal(k3, (C, CH), jnp.float32) * 0.1
    b2 = jax.random.normal(k4, (C,), jnp.float32) * 0.1

    # SpatialGate BasicConv: Conv2d(2,1,7,padding=3,bias=False) + BatchNorm2d(1)
    # in eval mode with default stats (mean=0, var=1, gamma=1, beta=0), no ReLU.
    # BN scale 1/sqrt(1+eps) folded into the conv weights, then converted to a
    # (2*HW, HW) Toeplitz matrix on host (cheap, done once per weight update),
    # stored in bf16 to halve HBM/VMEM traffic.
    conv_w = np.asarray(jax.random.normal(k5, (2, K, K), jnp.float32)) * 0.1
    conv_w_eff = conv_w / np.sqrt(1.0 + BN_EPS)
    mt = jnp.asarray(build_conv_matrix(conv_w_eff, H, W), dtype=jnp.bfloat16)

    params = pack_mlp_params(w1, b1, w2, b2)

    fwd = jax.jit(lambda xx: dual_gate(xx, params, mt))
    out = jax.block_until_ready(fwd(x))

    ref = dual_gate_reference(x, w1, b1, w2, b2, conv_w_eff)
    assert out.shape == x.shape and out.dtype == jnp.float32
    assert bool(jnp.all(jnp.isfinite(out)))
    # bf16 Toeplitz conv path (49-tap bf16xbf16 dot, f32 accumulate) -> ~1e-2 tolerance.
    assert bool(jnp.allclose(out, ref, atol=1e-2, rtol=1e-2))
    print("KERNEL_OK")
</pallas_src>

<mosaic_0001>
module attributes {stable_mosaic.version = 11 : i64} {
  func.func @dual_gate_kernel(%arg0: i32, %arg1: memref<2x128x256xf32, #tpu.memory_space<vmem>>, %arg2: memref<136x128xf32, #tpu.memory_space<vmem>>, %arg3: memref<512x256xbf16, #tpu.memory_space<vmem>>, %arg4: memref<2x128x256xf32, #tpu.memory_space<vmem>>, %arg5: memref<2x512xf32, #tpu.memory_space<vmem>>) attributes {dimension_semantics = [#tpu.dimension_semantics<parallel>], iteration_bounds = array<i64: 1>, scalar_prefetch = 0 : i64, scratch_operands = 1 : i64, tpu.core_type = #tpu.core_type<tc>, window_params = [{transform_indices = @transform_0, window_bounds = array<i64: 2, 128, 256>}, {pipeline_mode = #tpu.pipeline_mode<synchronous>, transform_indices = @transform_1, window_bounds = array<i64: 136, 128>}, {pipeline_mode = #tpu.pipeline_mode<synchronous>, transform_indices = @transform_2, window_bounds = array<i64: 512, 256>}, {transform_indices = @transform_3, window_bounds = array<i64: 2, 128, 256>}]} {
    %0 = tpu.iota {dimensions = array<i32: 1>} : vector<128x4xi32>
    %cst = arith.constant 0.000000e+00 : f32
    %1 = vector.broadcast %cst : f32 to vector<128x4xf32>
    %cst_0 = arith.constant 0.000000e+00 : f32
    %2 = vector.broadcast %cst_0 : f32 to vector<128x1xf32>
    %cst_1 = arith.constant 0xFF800000 : f32
    %3 = vector.broadcast %cst_1 : f32 to vector<128x1xf32>
    %c0 = arith.constant 0 : index
    %c0_2 = arith.constant 0 : index
    %c0_3 = arith.constant 0 : index
    %4 = vector.load %arg1[%c0, %c0_2, %c0_3] : memref<2x128x256xf32, #tpu.memory_space<vmem>>, vector<1x128x128xf32>
    %5 = vector.shape_cast %4 : vector<1x128x128xf32> to vector<128x128xf32>
    %cst_4 = arith.constant dense<0.000000e+00> : vector<128xf32>
    %6 = vector.multi_reduction <add>, %5, %cst_4 [1] : vector<128x128xf32> to vector<128xf32>
    %7 = vector.shape_cast %6 : vector<128xf32> to vector<128x1xf32>
    %8 = arith.addf %2, %7 : vector<128x1xf32>
    %cst_5 = arith.constant dense<0xFF800000> : vector<128xf32>
    %9 = vector.multi_reduction <maximumf>, %5, %cst_5 [1] : vector<128x128xf32> to vector<128xf32>
    %10 = vector.shape_cast %9 : vector<128xf32> to vector<128x1xf32>
    %11 = arith.maximumf %3, %10 : vector<128x1xf32>
    %c0_6 = arith.constant 0 : index
    %c0_7 = arith.constant 0 : index
    %c128 = arith.constant 128 : index
    %12 = vector.load %arg1[%c0_6, %c0_7, %c128] : memref<2x128x256xf32, #tpu.memory_space<vmem>>, vector<1x128x128xf32>
    %13 = vector.shape_cast %12 : vector<1x128x128xf32> to vector<128x128xf32>
    %cst_8 = arith.constant dense<0.000000e+00> : vector<128xf32>
    %14 = vector.multi_reduction <add>, %13, %cst_8 [1] : vector<128x128xf32> to vector<128xf32>
    %15 = vector.shape_cast %14 : vector<128xf32> to vector<128x1xf32>
    %16 = arith.addf %8, %15 : vector<128x1xf32>
    %cst_9 = arith.constant dense<0xFF800000> : vector<128xf32>
    %17 = vector.multi_reduction <maximumf>, %13, %cst_9 [1] : vector<128x128xf32> to vector<128xf32>
    %18 = vector.shape_cast %17 : vector<128xf32> to vector<128x1xf32>
    %19 = arith.maximumf %11, %18 : vector<128x1xf32>
    %c0_i32 = arith.constant 0 : i32
    %20 = vector.broadcast %c0_i32 : i32 to vector<128x4xi32>
    %21 = arith.cmpi eq, %0, %20 : vector<128x4xi32>
    %cst_10 = arith.constant 3.906250e-03 : f32
    %22 = vector.broadcast %cst_10 : f32 to vector<128x1xf32>
    %23 = arith.mulf %16, %22 : vector<128x1xf32>
    %24 = vector.shape_cast %23 : vector<128x1xf32> to vector<128x1xf32>
    %25 = vector.broadcast %24 : vector<128x1xf32> to vector<128x4xf32>
    %26 = arith.select %21, %25, %1 : vector<128x4xi1>, vector<128x4xf32>
    %c2_i32 = arith.constant 2 : i32
    %27 = vector.broadcast %c2_i32 : i32 to vector<128x4xi32>
    %28 = arith.cmpi eq, %0, %27 : vector<128x4xi32>
    %29 = vector.shape_cast %19 : vector<128x1xf32> to vector<128x1xf32>
    %30 = vector.broadcast %29 : vector<128x1xf32> to vector<128x4xf32>
    %31 = arith.select %28, %30, %26 : vector<128x4xi1>, vector<128x4xf32>
    %cst_11 = arith.constant 0.000000e+00 : f32
    %32 = vector.broadcast %cst_11 : f32 to vector<128x1xf32>
    %cst_12 = arith.constant 0xFF800000 : f32
    %33 = vector.broadcast %cst_12 : f32 to vector<128x1xf32>
    %c1 = arith.constant 1 : index
    %c0_13 = arith.constant 0 : index
    %c0_14 = arith.constant 0 : index
    %34 = vector.load %arg1[%c1, %c0_13, %c0_14] : memref<2x128x256xf32, #tpu.memory_space<vmem>>, vector<1x128x128xf32>
    %35 = vector.shape_cast %34 : vector<1x128x128xf32> to vector<128x128xf32>
    %cst_15 = arith.constant dense<0.000000e+00> : vector<128xf32>
    %36 = vector.multi_reduction <add>, %35, %cst_15 [1] : vector<128x128xf32> to vector<128xf32>
    %37 = vector.shape_cast %36 : vector<128xf32> to vector<128x1xf32>
    %38 = arith.addf %32, %37 : vector<128x1xf32>
    %cst_16 = arith.constant dense<0xFF800000> : vector<128xf32>
    %39 = vector.multi_reduction <maximumf>, %35, %cst_16 [1] : vector<128x128xf32> to vector<128xf32>
    %40 = vector.shape_cast %39 : vector<128xf32> to vector<128x1xf32>
    %41 = arith.maximumf %33, %40 : vector<128x1xf32>
    %c1_17 = arith.constant 1 : index
    %c0_18 = arith.constant 0 : index
    %c128_19 = arith.constant 128 : index
    %42 = vector.load %arg1[%c1_17, %c0_18, %c128_19] : memref<2x128x256xf32, #tpu.memory_space<vmem>>, vector<1x128x128xf32>
    %43 = vector.shape_cast %42 : vector<1x128x128xf32> to vector<128x128xf32>
    %cst_20 = arith.constant dense<0.000000e+00> : vector<128xf32>
    %44 = vector.multi_reduction <add>, %43, %cst_20 [1] : vector<128x128xf32> to vector<128xf32>
    %45 = vector.shape_cast %44 : vector<128xf32> to vector<128x1xf32>
    %46 = arith.addf %38, %45 : vector<128x1xf32>
    %cst_21 = arith.constant dense<0xFF800000> : vector<128xf32>
    %47 = vector.multi_reduction <maximumf>, %43, %cst_21 [1] : vector<128x128xf32> to vector<128xf32>
    %48 = vector.shape_cast %47 : vector<128xf32> to vector<128x1xf32>
    %49 = arith.maximumf %41, %48 : vector<128x1xf32>
    %c1_i32 = arith.constant 1 : i32
    %50 = vector.broadcast %c1_i32 : i32 to vector<128x4xi32>
    %51 = arith.cmpi eq, %0, %50 : vector<128x4xi32>
    %cst_22 = arith.constant 3.906250e-03 : f32
    %52 = vector.broadcast %cst_22 : f32 to vector<128x1xf32>
    %53 = arith.mulf %46, %52 : vector<128x1xf32>
    %54 = vector.shape_cast %53 : vector<128x1xf32> to vector<128x1xf32>
    %55 = vector.broadcast %54 : vector<128x1xf32> to vector<128x4xf32>
    %56 = arith.select %51, %55, %31 : vector<128x4xi1>, vector<128x4xf32>
    %c3_i32 = arith.constant 3 : i32
    %57 = vector.broadcast %c3_i32 : i32 to vector<128x4xi32>
    %58 = arith.cmpi eq, %0, %57 : vector<128x4xi32>
    %59 = vector.shape_cast %49 : vector<128x1xf32> to vector<128x1xf32>
    %60 = vector.broadcast %59 : vector<128x1xf32> to vector<128x4xf32>
    %61 = arith.select %58, %60, %56 : vector<128x4xi1>, vector<128x4xf32>
    %c0_23 = arith.constant 0 : index
    %c0_24 = arith.constant 0 : index
    %62 = vector.load %arg2[%c0_23, %c0_24] : memref<136x128xf32, #tpu.memory_space<vmem>>, vector<8x128xf32>
    %c8 = arith.constant 8 : index
    %c0_25 = arith.constant 0 : index
    %63 = vector.load %arg2[%c8, %c0_25] : memref<136x128xf32, #tpu.memory_space<vmem>>, vector<128x8xf32>
    %c8_26 = arith.constant 8 : index
    %c8_27 = arith.constant 8 : index
    %64 = vector.load %arg2[%c8_26, %c8_27] : memref<136x128xf32, #tpu.memory_space<vmem>>, vector<128x1xf32>
    %c8_28 = arith.constant 8 : index
    %c9 = arith.constant 9 : index
    %65 = vector.load %arg2[%c8_28, %c9] : memref<136x128xf32, #tpu.memory_space<vmem>>, vector<8x1xf32>
    %cst_29 = arith.constant dense<0.000000e+00> : vector<8x4xf32>
    %66 = tpu.matmul %62, %61, %cst_29 {dimension_numbers = #tpu.dot_dimension_numbers<[1], [0], [0], [1], [0, 0, 1, 1], [], []>} : vector<8x128xf32>, vector<128x4xf32>, vector<8x4xf32> -> vector<8x4xf32>
    %67 = vector.broadcast %65 : vector<8x1xf32> to vector<8x4xf32>
    %68 = arith.addf %66, %67 : vector<8x4xf32>
    %cst_30 = arith.constant 0.000000e+00 : f32
    %69 = vector.broadcast %cst_30 : f32 to vector<8x4xf32>
    %70 = arith.maximumf %68, %69 : vector<8x4xf32>
    %cst_31 = arith.constant dense<0.000000e+00> : vector<128x4xf32>
    %71 = tpu.matmul %63, %70, %cst_31 {dimension_numbers = #tpu.dot_dimension_numbers<[1], [0], [0], [1], [0, 0, 1, 1], [], []>} : vector<128x8xf32>, vector<8x4xf32>, vector<128x4xf32> -> vector<128x4xf32>
    %72 = vector.broadcast %64 : vector<128x1xf32> to vector<128x4xf32>
    %73 = arith.addf %71, %72 : vector<128x4xf32>
    %74 = vector.extract_strided_slice %73 {offsets = [0, 0], sizes = [128, 2], strides = [1, 1]} : vector<128x4xf32> to vector<128x2xf32>
    %75 = vector.extract_strided_slice %73 {offsets = [0, 2], sizes = [128, 2], strides = [1, 1]} : vector<128x4xf32> to vector<128x2xf32>
    %76 = arith.addf %74, %75 : vector<128x2xf32>
    %77 = arith.negf %76 : vector<128x2xf32>
    %78 = math.exp %77 : vector<128x2xf32>
    %cst_32 = arith.constant 1.000000e+00 : f32
    %79 = vector.broadcast %cst_32 : f32 to vector<128x2xf32>
    %80 = arith.addf %79, %78 : vector<128x2xf32>
    %81 = arith.divf %79, %80 : vector<128x2xf32>
    %82 = vector.extract_strided_slice %81 {offsets = [0, 0], sizes = [128, 1], strides = [1, 1]} : vector<128x2xf32> to vector<128x1xf32>
    %c0_33 = arith.constant 0 : index
    %c0_34 = arith.constant 0 : index
    %c0_35 = arith.constant 0 : index
    %83 = vector.load %arg1[%c0_33, %c0_34, %c0_35] : memref<2x128x256xf32, #tpu.memory_space<vmem>>, vector<1x128x128xf32>
    %84 = vector.shape_cast %83 : vector<1x128x128xf32> to vector<128x128xf32>
    %85 = vector.broadcast %82 : vector<128x1xf32> to vector<128x128xf32>
    %86 = arith.mulf %84, %85 : vector<128x128xf32>
    %cst_36 = arith.constant dense<0xFF800000> : vector<128xf32>
    %87 = vector.multi_reduction <maximumf>, %86, %cst_36 [0] : vector<128x128xf32> to vector<128xf32>
    %88 = vector.shape_cast %87 : vector<128xf32> to vector<1x128xf32>
    %c0_37 = arith.constant 0 : index
    %c0_38 = arith.constant 0 : index
    %89 = vector.load %arg5[%c0_37, %c0_38] : memref<2x512xf32, #tpu.memory_space<vmem>>, vector<1x128xf32>
    tpu.vector_store %arg5[%c0_37, %c0_38], %88 {strides = array<i32>} : memref<2x512xf32, #tpu.memory_space<vmem>>, vector<1x128xf32>,
    %cst_39 = arith.constant dense<0.000000e+00> : vector<128xf32>
    %90 = vector.multi_reduction <add>, %86, %cst_39 [0] : vector<128x128xf32> to vector<128xf32>
    %91 = vector.shape_cast %90 : vector<128xf32> to vector<1x128xf32>
    %cst_40 = arith.constant 1.280000e+02 : f32
    %92 = vector.broadcast %cst_40 : f32 to vector<1x128xf32>
    %93 = arith.divf %91, %92 : vector<1x128xf32>
    %c0_41 = arith.constant 0 : index
    %c256 = arith.constant 256 : index
    %94 = vector.load %arg5[%c0_41, %c256] : memref<2x512xf32, #tpu.memory_space<vmem>>, vector<1x128xf32>
    tpu.vector_store %arg5[%c0_41, %c256], %93 {strides = array<i32>} : memref<2x512xf32, #tpu.memory_space<vmem>>, vector<1x128xf32>,
    %c0_42 = arith.constant 0 : index
    %c0_43 = arith.constant 0 : index
    %c128_44 = arith.constant 128 : index
    %95 = vector.load %arg1[%c0_42, %c0_43, %c128_44] : memref<2x128x256xf32, #tpu.memory_space<vmem>>, vector<1x128x128xf32>
    %96 = vector.shape_cast %95 : vector<1x128x128xf32> to vector<128x128xf32>
    %97 = vector.broadcast %82 : vector<128x1xf32> to vector<128x128xf32>
    %98 = arith.mulf %96, %97 : vector<128x128xf32>
    %cst_45 = arith.constant dense<0xFF800000> : vector<128xf32>
    %99 = vector.multi_reduction <maximumf>, %98, %cst_45 [0] : vector<128x128xf32> to vector<128xf32>
    %100 = vector.shape_cast %99 : vector<128xf32> to vector<1x128xf32>
    %c0_46 = arith.constant 0 : index
    %c128_47 = arith.constant 128 : index
    %101 = vector.load %arg5[%c0_46, %c128_47] : memref<2x512xf32, #tpu.memory_space<vmem>>, vector<1x128xf32>
    tpu.vector_store %arg5[%c0_46, %c128_47], %100 {strides = array<i32>} : memref<2x512xf32, #tpu.memory_space<vmem>>, vector<1x128xf32>,
    %cst_48 = arith.constant dense<0.000000e+00> : vector<128xf32>
    %102 = vector.multi_reduction <add>, %98, %cst_48 [0] : vector<128x128xf32> to vector<128xf32>
    %103 = vector.shape_cast %102 : vector<128xf32> to vector<1x128xf32>
    %cst_49 = arith.constant 1.280000e+02 : f32
    %104 = vector.broadcast %cst_49 : f32 to vector<1x128xf32>
    %105 = arith.divf %103, %104 : vector<1x128xf32>
    %c0_50 = arith.constant 0 : index
    %c384 = arith.constant 384 : index
    %106 = vector.load %arg5[%c0_50, %c384] : memref<2x512xf32, #tpu.memory_space<vmem>>, vector<1x128xf32>
    tpu.vector_store %arg5[%c0_50, %c384], %105 {strides = array<i32>} : memref<2x512xf32, #tpu.memory_space<vmem>>, vector<1x128xf32>,
    %107 = vector.extract_strided_slice %81 {offsets = [0, 1], sizes = [128, 1], strides = [1, 1]} : vector<128x2xf32> to vector<128x1xf32>
    %c1_51 = arith.constant 1 : index
    %c0_52 = arith.constant 0 : index
    %c0_53 = arith.constant 0 : index
    %108 = vector.load %arg1[%c1_51, %c0_52, %c0_53] : memref<2x128x256xf32, #tpu.memory_space<vmem>>, vector<1x128x128xf32>
    %109 = vector.shape_cast %108 : vector<1x128x128xf32> to vector<128x128xf32>
    %110 = vector.broadcast %107 : vector<128x1xf32> to vector<128x128xf32>
    %111 = arith.mulf %109, %110 : vector<128x128xf32>
    %cst_54 = arith.constant dense<0xFF800000> : vector<128xf32>
    %112 = vector.multi_reduction <maximumf>, %111, %cst_54 [0] : vector<128x128xf32> to vector<128xf32>
    %113 = vector.shape_cast %112 : vector<128xf32> to vector<1x128xf32>
    %c1_55 = arith.constant 1 : index
    %c0_56 = arith.constant 0 : index
    %114 = vector.load %arg5[%c1_55, %c0_56] : memref<2x512xf32, #tpu.memory_space<vmem>>, vector<1x128xf32>
    tpu.vector_store %arg5[%c1_55, %c0_56], %113 {strides = array<i32>} : memref<2x512xf32, #tpu.memory_space<vmem>>, vector<1x128xf32>,
    %cst_57 = arith.constant dense<0.000000e+00> : vector<128xf32>
    %115 = vector.multi_reduction <add>, %111, %cst_57 [0] : vector<128x128xf32> to vector<128xf32>
    %116 = vector.shape_cast %115 : vector<128xf32> to vector<1x128xf32>
    %cst_58 = arith.constant 1.280000e+02 : f32
    %117 = vector.broadcast %cst_58 : f32 to vector<1x128xf32>
    %118 = arith.divf %116, %117 : vector<1x128xf32>
    %c1_59 = arith.constant 1 : index
    %c256_60 = arith.constant 256 : index
    %119 = vector.load %arg5[%c1_59, %c256_60] : memref<2x512xf32, #tpu.memory_space<vmem>>, vector<1x128xf32>
    tpu.vector_store %arg5[%c1_59, %c256_60], %118 {strides = array<i32>} : memref<2x512xf32, #tpu.memory_space<vmem>>, vector<1x128xf32>,
    %c1_61 = arith.constant 1 : index
    %c0_62 = arith.constant 0 : index
    %c128_63 = arith.constant 128 : index
    %120 = vector.load %arg1[%c1_61, %c0_62, %c128_63] : memref<2x128x256xf32, #tpu.memory_space<vmem>>, vector<1x128x128xf32>
    %121 = vector.shape_cast %120 : vector<1x128x128xf32> to vector<128x128xf32>
    %122 = vector.broadcast %107 : vector<128x1xf32> to vector<128x128xf32>
    %123 = arith.mulf %121, %122 : vector<128x128xf32>
    %cst_64 = arith.constant dense<0xFF800000> : vector<128xf32>
    %124 = vector.multi_reduction <maximumf>, %123, %cst_64 [0] : vector<128x128xf32> to vector<128xf32>
    %125 = vector.shape_cast %124 : vector<128xf32> to vector<1x128xf32>
    %c1_65 = arith.constant 1 : index
    %c128_66 = arith.constant 128 : index
    %126 = vector.load %arg5[%c1_65, %c128_66] : memref<2x512xf32, #tpu.memory_space<vmem>>, vector<1x128xf32>
    tpu.vector_store %arg5[%c1_65, %c128_66], %125 {strides = array<i32>} : memref<2x512xf32, #tpu.memory_space<vmem>>, vector<1x128xf32>,
    %cst_67 = arith.constant dense<0.000000e+00> : vector<128xf32>
    %127 = vector.multi_reduction <add>, %123, %cst_67 [0] : vector<128x128xf32> to vector<128xf32>
    %128 = vector.shape_cast %127 : vector<128xf32> to vector<1x128xf32>
    %cst_68 = arith.constant 1.280000e+02 : f32
    %129 = vector.broadcast %cst_68 : f32 to vector<1x128xf32>
    %130 = arith.divf %128, %129 : vector<1x128xf32>
    %c1_69 = arith.constant 1 : index
    %c384_70 = arith.constant 384 : index
    %131 = vector.load %arg5[%c1_69, %c384_70] : memref<2x512xf32, #tpu.memory_space<vmem>>, vector<1x128xf32>
    tpu.vector_store %arg5[%c1_69, %c384_70], %130 {strides = array<i32>} : memref<2x512xf32, #tpu.memory_space<vmem>>, vector<1x128xf32>,
    %c0_71 = arith.constant 0 : index
    %c0_72 = arith.constant 0 : index
    %132 = vector.load %arg5[%c0_71, %c0_72] : memref<2x512xf32, #tpu.memory_space<vmem>>, vector<2x512xf32>
    %133 = arith.truncf %132 : vector<2x512xf32> to vector<2x512xbf16>
    %c0_73 = arith.constant 0 : index
    %c0_74 = arith.constant 0 : index
    %134 = vector.load %arg3[%c0_73, %c0_74] : memref<512x256xbf16, #tpu.memory_space<vmem>>, vector<512x256xbf16>
    %cst_75 = arith.constant dense<0.000000e+00> : vector<2x256xf32>
    %135 = tpu.matmul %133, %134, %cst_75 {dimension_numbers = #tpu.dot_dimension_numbers<[1], [0], [0], [1], [0, 0, 1, 1], [], []>} : vector<2x512xbf16>, vector<512x256xbf16>, vector<2x256xf32> -> vector<2x256xf32>
    %136 = arith.negf %135 : vector<2x256xf32>
    %137 = math.exp %136 : vector<2x256xf32>
    %cst_76 = arith.constant 1.000000e+00 : f32
    %138 = vector.broadcast %cst_76 : f32 to vector<2x256xf32>
    %139 = arith.addf %138, %137 : vector<2x256xf32>
    %140 = arith.divf %138, %139 : vector<2x256xf32>
    %141 = vector.extract_strided_slice %81 {offsets = [0, 0], sizes = [128, 1], strides = [1, 1]} : vector<128x2xf32> to vector<128x1xf32>
    %c0_77 = arith.constant 0 : index
    %c0_78 = arith.constant 0 : index
    %c0_79 = arith.constant 0 : index
    %142 = vector.load %arg1[%c0_77, %c0_78, %c0_79] : memref<2x128x256xf32, #tpu.memory_space<vmem>>, vector<1x128x128xf32>
    %143 = vector.shape_cast %142 : vector<1x128x128xf32> to vector<128x128xf32>
    %144 = vector.extract_strided_slice %140 {offsets = [0, 0], sizes = [1, 128], strides = [1, 1]} : vector<2x256xf32> to vector<1x128xf32>
    %145 = vector.broadcast %141 : vector<128x1xf32> to vector<128x128xf32>
    %146 = arith.mulf %143, %145 : vector<128x128xf32>
    %147 = vector.broadcast %144 : vector<1x128xf32> to vector<128x128xf32>
    %148 = arith.mulf %146, %147 : vector<128x128xf32>
    %c0_80 = arith.constant 0 : index
    %c0_81 = arith.constant 0 : index
    %c0_82 = arith.constant 0 : index
    %149 = vector.load %arg4[%c0_80, %c0_81, %c0_82] : memref<2x128x256xf32, #tpu.memory_space<vmem>>, vector<1x128x128xf32>
    %150 = vector.shape_cast %149 : vector<1x128x128xf32> to vector<128x128xf32>
    %151 = vector.shape_cast %148 : vector<128x128xf32> to vector<1x128x128xf32>
    tpu.vector_store %arg4[%c0_80, %c0_81, %c0_82], %151 {strides = array<i32>} : memref<2x128x256xf32, #tpu.memory_space<vmem>>, vector<1x128x128xf32>,
    %c0_83 = arith.constant 0 : index
    %c0_84 = arith.constant 0 : index
    %c128_85 = arith.constant 128 : index
    %152 = vector.load %arg1[%c0_83, %c0_84, %c128_85] : memref<2x128x256xf32, #tpu.memory_space<vmem>>, vector<1x128x128xf32>
    %153 = vector.shape_cast %152 : vector<1x128x128xf32> to vector<128x128xf32>
    %154 = vector.extract_strided_slice %140 {offsets = [0, 128], sizes = [1, 128], strides = [1, 1]} : vector<2x256xf32> to vector<1x128xf32>
    %155 = vector.broadcast %141 : vector<128x1xf32> to vector<128x128xf32>
    %156 = arith.mulf %153, %155 : vector<128x128xf32>
    %157 = vector.broadcast %154 : vector<1x128xf32> to vector<128x128xf32>
    %158 = arith.mulf %156, %157 : vector<128x128xf32>
    %c0_86 = arith.constant 0 : index
    %c0_87 = arith.constant 0 : index
    %c128_88 = arith.constant 128 : index
    %159 = vector.load %arg4[%c0_86, %c0_87, %c128_88] : memref<2x128x256xf32, #tpu.memory_space<vmem>>, vector<1x128x128xf32>
    %160 = vector.shape_cast %159 : vector<1x128x128xf32> to vector<128x128xf32>
    %161 = vector.shape_cast %158 : vector<128x128xf32> to vector<1x128x128xf32>
    tpu.vector_store %arg4[%c0_86, %c0_87, %c128_88], %161 {strides = array<i32>} : memref<2x128x256xf32, #tpu.memory_space<vmem>>, vector<1x128x128xf32>,
    %162 = vector.extract_strided_slice %81 {offsets = [0, 1], sizes = [128, 1], strides = [1, 1]} : vector<128x2xf32> to vector<128x1xf32>
    %c1_89 = arith.constant 1 : index
    %c0_90 = arith.constant 0 : index
    %c0_91 = arith.constant 0 : index
    %163 = vector.load %arg1[%c1_89, %c0_90, %c0_91] : memref<2x128x256xf32, #tpu.memory_space<vmem>>, vector<1x128x128xf32>
    %164 = vector.shape_cast %163 : vector<1x128x128xf32> to vector<128x128xf32>
    %165 = vector.extract_strided_slice %140 {offsets = [1, 0], sizes = [1, 128], strides = [1, 1]} : vector<2x256xf32> to vector<1x128xf32>
    %166 = vector.broadcast %162 : vector<128x1xf32> to vector<128x128xf32>
    %167 = arith.mulf %164, %166 : vector<128x128xf32>
    %168 = vector.broadcast %165 : vector<1x128xf32> to vector<128x128xf32>
    %169 = arith.mulf %167, %168 : vector<128x128xf32>
    %c1_92 = arith.constant 1 : index
    %c0_93 = arith.constant 0 : index
    %c0_94 = arith.constant 0 : index
    %170 = vector.load %arg4[%c1_92, %c0_93, %c0_94] : memref<2x128x256xf32, #tpu.memory_space<vmem>>, vector<1x128x128xf32>
    %171 = vector.shape_cast %170 : vector<1x128x128xf32> to vector<128x128xf32>
    %172 = vector.shape_cast %169 : vector<128x128xf32> to vector<1x128x128xf32>
    tpu.vector_store %arg4[%c1_92, %c0_93, %c0_94], %172 {strides = array<i32>} : memref<2x128x256xf32, #tpu.memory_space<vmem>>, vector<1x128x128xf32>,
    %c1_95 = arith.constant 1 : index
    %c0_96 = arith.constant 0 : index
    %c128_97 = arith.constant 128 : index
    %173 = vector.load %arg1[%c1_95, %c0_96, %c128_97] : memref<2x128x256xf32, #tpu.memory_space<vmem>>, vector<1x128x128xf32>
    %174 = vector.shape_cast %173 : vector<1x128x128xf32> to vector<128x128xf32>
    %175 = vector.extract_strided_slice %140 {offsets = [1, 128], sizes = [1, 128], strides = [1, 1]} : vector<2x256xf32> to vector<1x128xf32>
    %176 = vector.broadcast %162 : vector<128x1xf32> to vector<128x128xf32>
    %177 = arith.mulf %174, %176 : vector<128x128xf32>
    %178 = vector.broadcast %175 : vector<1x128xf32> to vector<128x128xf32>
    %179 = arith.mulf %177, %178 : vector<128x128xf32>
    %c1_98 = arith.constant 1 : index
    %c0_99 = arith.constant 0 : index
    %c128_100 = arith.constant 128 : index
    %180 = vector.load %arg4[%c1_98, %c0_99, %c128_100] : memref<2x128x256xf32, #tpu.memory_space<vmem>>, vector<1x128x128xf32>
    %181 = vector.shape_cast %180 : vector<1x128x128xf32> to vector<128x128xf32>
    %182 = vector.shape_cast %179 : vector<128x128xf32> to vector<1x128x128xf32>
    tpu.vector_store %arg4[%c1_98, %c0_99, %c128_100], %182 {strides = array<i32>} : memref<2x128x256xf32, #tpu.memory_space<vmem>>, vector<1x128x128xf32>,
    return
  }
  func.func @transform_0(%arg0: i32) -> (i32, i32, i32) {
    %c0_i32 = arith.constant 0 : i32
    %c0_i32_0 = arith.constant 0 : i32
    %c0_i32_1 = arith.constant 0 : i32
    return %arg0, %c0_i32, %c0_i32_0 : i32, i32, i32
  }
  func.func @transform_1(%arg0: i32) -> (i32, i32) {
    %c0_i32 = arith.constant 0 : i32
    %c0_i32_0 = arith.constant 0 : i32
    %c0_i32_1 = arith.constant 0 : i32
    return %c0_i32, %c0_i32_0 : i32, i32
  }
  func.func @transform_2(%arg0: i32) -> (i32, i32) {
    %c0_i32 = arith.constant 0 : i32
    %c0_i32_0 = arith.constant 0 : i32
    %c0_i32_1 = arith.constant 0 : i32
    return %c0_i32, %c0_i32_0 : i32, i32
  }
  func.func @transform_3(%arg0: i32) -> (i32, i32, i32) {
    %c0_i32 = arith.constant 0 : i32
    %c0_i32_0 = arith.constant 0 : i32
    %c0_i32_1 = arith.constant 0 : i32
    return %arg0, %c0_i32, %c0_i32_0 : i32, i32, i32
  }
}

</mosaic_0001>

<llo_original>
// kernel: _lambda_.1
$region0: #{_lambda_.1}
  #allocation0 [shape = 'u32[]', space=smem, size = 0x4, offset = 0x4, fixed_abs, tag = 'smem constant byte address 0x4 - core index']
  #allocation1 [shape = 'u32[72,128]{1,0:T(1,128)}', space=vmem, size = 0x9000, scoped, tag = 'internal scratch']
  #allocation2 [shape = 'f32[2,512]{1,0:T(2,128)}', space=vmem, size = 0x1000, scoped, tag = 'scratch operand']
  %s0 = inlined_call_operand.vmem [shape: f32[2,128,256], index: 0, kind: input, shape index: {}]
  %s1 = inlined_call_operand.vmem [shape: f32[136,128], index: 1, kind: input, shape index: {}]
  %s2 = inlined_call_operand.vmem [shape: bf16[512,256], index: 2, kind: input, shape index: {}]
  %s3 = inlined_call_operand.vmem [shape: f32[2,128,256], index: 3, kind: output, shape index: {}]
  %s4 = sld [smem:[#allocation0]]
  $region22: #{_lambda_.1} parent=0
    _
  %s6 = ssub.s32 1, %s4
  %s7 = scalar_select 0, %s6, %s4
  // Predicated region
  $region2: #{_lambda_.1} parent=0 // pred_check
    _
  $region3: #{_lambda_.1} parent=0 // pred_check_branch
    %9 = sbr.rel (0) target = $region5
  $region4: #{_lambda_.1} parent=0 // pred_region
    _
  $region5: #{_lambda_.1} parent=0 // pred_fallthru
    _
  // Predicated region
  $region6: #{_lambda_.1} parent=0 // pred_check
    _
  $region7: #{_lambda_.1} parent=0 // pred_check_branch
    %11 = sbr.rel (0) target = $region9
  $region8: #{_lambda_.1} parent=0 // pred_region
    _
  $region9: #{_lambda_.1} parent=0 // pred_fallthru
    _
  // Predicated region
  $region10: #{_lambda_.1} parent=0 // pred_check
    _
  $region11: #{_lambda_.1} parent=0 // pred_check_branch
    %13 = sbr.rel (0) target = $region13
  $region12: #{_lambda_.1} parent=0 // pred_region
    _
  $region13: #{_lambda_.1} parent=0 // pred_fallthru
    _
  %v14 = vlaneseq
  %v15 = vand.u32 %v14, 127
  %v16 = vld [vmem:[%s0] sm:$0xff]
  %v17 = vld [vmem:[%s0 + $0x10] sm:$0xff]
  %v18 = vld [vmem:[%s0 + $0x20] sm:$0xff]
  %v19 = vld [vmem:[%s0 + $0x30] sm:$0xff]
  %v20 = vld [vmem:[%s0 + $0x40] sm:$0xff]
  %v21 = vld [vmem:[%s0 + $0x50] sm:$0xff]
  %v22 = vld [vmem:[%s0 + $0x60] sm:$0xff]
  %v23 = vld [vmem:[%s0 + $0x70] sm:$0xff]
  %v24 = vld [vmem:[%s0 + $0x80] sm:$0xff]
  %v25 = vld [vmem:[%s0 + $0x90] sm:$0xff]
  %v26 = vld [vmem:[%s0 + $0xa0] sm:$0xff]
  %v27 = vld [vmem:[%s0 + $0xb0] sm:$0xff]
  %v28 = vld [vmem:[%s0 + $0xc0] sm:$0xff]
  %v29 = vld [vmem:[%s0 + $0xd0] sm:$0xff]
  %v30 = vld [vmem:[%s0 + $0xe0] sm:$0xff]
  %v31 = vld [vmem:[%s0 + $0xf0] sm:$0xff]
  %32 = vadd.xlane.f32.xlu0 %v16
  %v33 = vpop.xlane.xlu0 %32
  %34 = vadd.xlane.f32.xlu0 %v17
  %v35 = vpop.xlane.xlu0 %34
  %36 = vadd.xlane.f32.xlu0 %v18
  %v37 = vpop.xlane.xlu0 %36
  %38 = vadd.xlane.f32.xlu0 %v19
  %v39 = vpop.xlane.xlu0 %38
  %40 = vadd.xlane.f32.xlu0 %v20
  %v41 = vpop.xlane.xlu0 %40
  %42 = vadd.xlane.f32.xlu0 %v21
  %v43 = vpop.xlane.xlu0 %42
  %44 = vadd.xlane.f32.xlu0 %v22
  %v45 = vpop.xlane.xlu0 %44
  %46 = vadd.xlane.f32.xlu0 %v23
  %v47 = vpop.xlane.xlu0 %46
  %48 = vadd.xlane.f32.xlu0 %v24
  %v49 = vpop.xlane.xlu0 %48
  %50 = vadd.xlane.f32.xlu0 %v25
  %v51 = vpop.xlane.xlu0 %50
  %52 = vadd.xlane.f32.xlu0 %v26
  %v53 = vpop.xlane.xlu0 %52
  %54 = vadd.xlane.f32.xlu0 %v27
  %v55 = vpop.xlane.xlu0 %54
  %56 = vadd.xlane.f32.xlu0 %v28
  %v57 = vpop.xlane.xlu0 %56
  %58 = vadd.xlane.f32.xlu0 %v29
  %v59 = vpop.xlane.xlu0 %58
  %60 = vadd.xlane.f32.xlu0 %v30
  %v61 = vpop.xlane.xlu0 %60
  %62 = vadd.xlane.f32.xlu0 %v31
  %v63 = vpop.xlane.xlu0 %62
  %v64 = vadd.f32 %v33, 0.0
  %v65 = vadd.f32 %v35, 0.0
  %v66 = vadd.f32 %v37, 0.0
  %v67 = vadd.f32 %v39, 0.0
  %v68 = vadd.f32 %v41, 0.0
  %v69 = vadd.f32 %v43, 0.0
  %v70 = vadd.f32 %v45, 0.0
  %v71 = vadd.f32 %v47, 0.0
  %v72 = vadd.f32 %v49, 0.0
  %v73 = vadd.f32 %v51, 0.0
  %v74 = vadd.f32 %v53, 0.0
  %v75 = vadd.f32 %v55, 0.0
  %v76 = vadd.f32 %v57, 0.0
  %v77 = vadd.f32 %v59, 0.0
  %v78 = vadd.f32 %v61, 0.0
  %v79 = vadd.f32 %v63, 0.0
  %80 = vmax.xlane.f32.xlu0 %v16
  %v81 = vpop.xlane.xlu0 %80
  %82 = vmax.xlane.f32.xlu0 %v17
  %v83 = vpop.xlane.xlu0 %82
  %84 = vmax.xlane.f32.xlu0 %v18
  %v85 = vpop.xlane.xlu0 %84
  %86 = vmax.xlane.f32.xlu0 %v19
  %v87 = vpop.xlane.xlu0 %86
  %88 = vmax.xlane.f32.xlu0 %v20
  %v89 = vpop.xlane.xlu0 %88
  %90 = vmax.xlane.f32.xlu0 %v21
  %v91 = vpop.xlane.xlu0 %90
  %92 = vmax.xlane.f32.xlu0 %v22
  %v93 = vpop.xlane.xlu0 %92
  %94 = vmax.xlane.f32.xlu0 %v23
  %v95 = vpop.xlane.xlu0 %94
  %96 = vmax.xlane.f32.xlu0 %v24
  %v97 = vpop.xlane.xlu0 %96
  %98 = vmax.xlane.f32.xlu0 %v25
  %v99 = vpop.xlane.xlu0 %98
  %100 = vmax.xlane.f32.xlu0 %v26
  %v101 = vpop.xlane.xlu0 %100
  %102 = vmax.xlane.f32.xlu0 %v27
  %v103 = vpop.xlane.xlu0 %102
  %104 = vmax.xlane.f32.xlu0 %v28
  %v105 = vpop.xlane.xlu0 %104
  %106 = vmax.xlane.f32.xlu0 %v29
  %v107 = vpop.xlane.xlu0 %106
  %108 = vmax.xlane.f32.xlu0 %v30
  %v109 = vpop.xlane.xlu0 %108
  %110 = vmax.xlane.f32.xlu0 %v31
  %v111 = vpop.xlane.xlu0 %110
  %v112 = vld [vmem:[%s0 + $0x8] sm:$0xff]
  %v113 = vld [vmem:[%s0 + $0x18] sm:$0xff]
  %v114 = vld [vmem:[%s0 + $0x28] sm:$0xff]
  %v115 = vld [vmem:[%s0 + $0x38] sm:$0xff]
  %v116 = vld [vmem:[%s0 + $0x48] sm:$0xff]
  %v117 = vld [vmem:[%s0 + $0x58] sm:$0xff]
  %v118 = vld [vmem:[%s0 + $0x68] sm:$0xff]
  %v119 = vld [vmem:[%s0 + $0x78] sm:$0xff]
  %v120 = vld [vmem:[%s0 + $0x88] sm:$0xff]
  %v121 = vld [vmem:[%s0 + $0x98] sm:$0xff]
  %v122 = vld [vmem:[%s0 + $0xa8] sm:$0xff]
  %v123 = vld [vmem:[%s0 + $0xb8] sm:$0xff]
  %v124 = vld [vmem:[%s0 + $0xc8] sm:$0xff]
  %v125 = vld [vmem:[%s0 + $0xd8] sm:$0xff]
  %v126 = vld [vmem:[%s0 + $0xe8] sm:$0xff]
  %v127 = vld [vmem:[%s0 + $0xf8] sm:$0xff]
  %128 = vadd.xlane.f32.xlu0 %v112
  %v129 = vpop.xlane.xlu0 %128
  %130 = vadd.xlane.f32.xlu0 %v113
  %v131 = vpop.xlane.xlu0 %130
  %132 = vadd.xlane.f32.xlu0 %v114
  %v133 = vpop.xlane.xlu0 %132
  %134 = vadd.xlane.f32.xlu0 %v115
  %v135 = vpop.xlane.xlu0 %134
  %136 = vadd.xlane.f32.xlu0 %v116
  %v137 = vpop.xlane.xlu0 %136
  %138 = vadd.xlane.f32.xlu0 %v117
  %v139 = vpop.xlane.xlu0 %138
  %140 = vadd.xlane.f32.xlu0 %v118
  %v141 = vpop.xlane.xlu0 %140
  %142 = vadd.xlane.f32.xlu0 %v119
  %v143 = vpop.xlane.xlu0 %142
  %144 = vadd.xlane.f32.xlu0 %v120
  %v145 = vpop.xlane.xlu0 %144
  %146 = vadd.xlane.f32.xlu0 %v121
  %v147 = vpop.xlane.xlu0 %146
  %148 = vadd.xlane.f32.xlu0 %v122
  %v149 = vpop.xlane.xlu0 %148
  %150 = vadd.xlane.f32.xlu0 %v123
  %v151 = vpop.xlane.xlu0 %150
  %152 = vadd.xlane.f32.xlu0 %v124
  %v153 = vpop.xlane.xlu0 %152
  %154 = vadd.xlane.f32.xlu0 %v125
  %v155 = vpop.xlane.xlu0 %154
  %156 = vadd.xlane.f32.xlu0 %v126
  %v157 = vpop.xlane.xlu0 %156
  %158 = vadd.xlane.f32.xlu0 %v127
  %v159 = vpop.xlane.xlu0 %158
  %v160 = vadd.f32 %v64, %v129
  %v161 = vadd.f32 %v65, %v131
  %v162 = vadd.f32 %v66, %v133
  %v163 = vadd.f32 %v67, %v135
  %v164 = vadd.f32 %v68, %v137
  %v165 = vadd.f32 %v69, %v139
  %v166 = vadd.f32 %v70, %v141
  %v167 = vadd.f32 %v71, %v143
  %v168 = vadd.f32 %v72, %v145
  %v169 = vadd.f32 %v73, %v147
  %v170 = vadd.f32 %v74, %v149
  %v171 = vadd.f32 %v75, %v151
  %v172 = vadd.f32 %v76, %v153
  %v173 = vadd.f32 %v77, %v155
  %v174 = vadd.f32 %v78, %v157
  %v175 = vadd.f32 %v79, %v159
  %176 = vmax.xlane.f32.xlu0 %v112
  %v177 = vpop.xlane.xlu0 %176
  %178 = vmax.xlane.f32.xlu0 %v113
  %v179 = vpop.xlane.xlu0 %178
  %180 = vmax.xlane.f32.xlu0 %v114
  %v181 = vpop.xlane.xlu0 %180
  %182 = vmax.xlane.f32.xlu0 %v115
  %v183 = vpop.xlane.xlu0 %182
  %184 = vmax.xlane.f32.xlu0 %v116
  %v185 = vpop.xlane.xlu0 %184
  %186 = vmax.xlane.f32.xlu0 %v117
  %v187 = vpop.xlane.xlu0 %186
  %188 = vmax.xlane.f32.xlu0 %v118
  %v189 = vpop.xlane.xlu0 %188
  %190 = vmax.xlane.f32.xlu0 %v119
  %v191 = vpop.xlane.xlu0 %190
  %192 = vmax.xlane.f32.xlu0 %v120
  %v193 = vpop.xlane.xlu0 %192
  %194 = vmax.xlane.f32.xlu0 %v121
  %v195 = vpop.xlane.xlu0 %194
  %196 = vmax.xlane.f32.xlu0 %v122
  %v197 = vpop.xlane.xlu0 %196
  %198 = vmax.xlane.f32.xlu0 %v123
  %v199 = vpop.xlane.xlu0 %198
  %200 = vmax.xlane.f32.xlu0 %v124
  %v201 = vpop.xlane.xlu0 %200
  %202 = vmax.xlane.f32.xlu0 %v125
  %v203 = vpop.xlane.xlu0 %202
  %204 = vmax.xlane.f32.xlu0 %v126
  %v205 = vpop.xlane.xlu0 %204
  %206 = vmax.xlane.f32.xlu0 %v127
  %v207 = vpop.xlane.xlu0 %206
  %v208 = vmax.f32 %v81, %v177
  %v209 = vmax.f32 %v83, %v179
  %v210 = vmax.f32 %v85, %v181
  %v211 = vmax.f32 %v87, %v183
  %v212 = vmax.f32 %v89, %v185
  %v213 = vmax.f32 %v91, %v187
  %v214 = vmax.f32 %v93, %v189
  %v215 = vmax.f32 %v95, %v191
  %v216 = vmax.f32 %v97, %v193
  %v217 = vmax.f32 %v99, %v195
  %v218 = vmax.f32 %v101, %v197
  %v219 = vmax.f32 %v103, %v199
  %v220 = vmax.f32 %v105, %v201
  %v221 = vmax.f32 %v107, %v203
  %v222 = vmax.f32 %v109, %v205
  %v223 = vmax.f32 %v111, %v207
  %vm224 = vcmp.eq.s32.totalorder %v15, 0
  %v225 = vmul.f32 %v160, 0.00390625
  %v226 = vmul.f32 %v161, 0.00390625
  %v227 = vmul.f32 %v162, 0.00390625
  %v228 = vmul.f32 %v163, 0.00390625
  %v229 = vmul.f32 %v164, 0.00390625
  %v230 = vmul.f32 %v165, 0.00390625
  %v231 = vmul.f32 %v166, 0.00390625
  %v232 = vmul.f32 %v167, 0.00390625
  %v233 = vmul.f32 %v168, 0.00390625
  %v234 = vmul.f32 %v169, 0.00390625
  %v235 = vmul.f32 %v170, 0.00390625
  %v236 = vmul.f32 %v171, 0.00390625
  %v237 = vmul.f32 %v172, 0.00390625
  %v238 = vmul.f32 %v173, 0.00390625
  %v239 = vmul.f32 %v174, 0.00390625
  %v240 = vmul.f32 %v175, 0.00390625
  %v241 = vsel %vm224, %v225, 0.0
  %v242 = vsel %vm224, %v226, 0.0
  %v243 = vsel %vm224, %v227, 0.0
  %v244 = vsel %vm224, %v228, 0.0
  %v245 = vsel %vm224, %v229, 0.0
  %v246 = vsel %vm224, %v230, 0.0
  %v247 = vsel %vm224, %v231, 0.0
  %v248 = vsel %vm224, %v232, 0.0
  %v249 = vsel %vm224, %v233, 0.0
  %v250 = vsel %vm224, %v234, 0.0
  %v251 = vsel %vm224, %v235, 0.0
  %v252 = vsel %vm224, %v236, 0.0
  %v253 = vsel %vm224, %v237, 0.0
  %v254 = vsel %vm224, %v238, 0.0
  %v255 = vsel %vm224, %v239, 0.0
  %v256 = vsel %vm224, %v240, 0.0
  %vm257 = vcmp.eq.s32.totalorder %v15, 2
  %v258 = vsel %vm257, %v208, %v241
  %v259 = vsel %vm257, %v209, %v242
  %v260 = vsel %vm257, %v210, %v243
  %v261 = vsel %vm257, %v211, %v244
  %v262 = vsel %vm257, %v212, %v245
  %v263 = vsel %vm257, %v213, %v246
  %v264 = vsel %vm257, %v214, %v247
  %v265 = vsel %vm257, %v215, %v248
  %v266 = vsel %vm257, %v216, %v249
  %v267 = vsel %vm257, %v217, %v250
  %v268 = vsel %vm257, %v218, %v251
  %v269 = vsel %vm257, %v219, %v252
  %v270 = vsel %vm257, %v220, %v253
  %v271 = vsel %vm257, %v221, %v254
  %v272 = vsel %vm257, %v222, %v255
  %v273 = vsel %vm257, %v223, %v256
  %s274 = scalar_lea.vmem %s0, 256
  %v275 = vld [vmem:[%s274] sm:$0xff]
  %v276 = vld [vmem:[%s274 + $0x10] sm:$0xff]
  %v277 = vld [vmem:[%s274 + $0x20] sm:$0xff]
  %v278 = vld [vmem:[%s274 + $0x30] sm:$0xff]
  %v279 = vld [vmem:[%s274 + $0x40] sm:$0xff]
  %v280 = vld [vmem:[%s274 + $0x50] sm:$0xff]
  %v281 = vld [vmem:[%s274 + $0x60] sm:$0xff]
  %v282 = vld [vmem:[%s274 + $0x70] sm:$0xff]
  %v283 = vld [vmem:[%s274 + $0x80] sm:$0xff]
  %v284 = vld [vmem:[%s274 + $0x90] sm:$0xff]
  %v285 = vld [vmem:[%s274 + $0xa0] sm:$0xff]
  %v286 = vld [vmem:[%s274 + $0xb0] sm:$0xff]
  %v287 = vld [vmem:[%s274 + $0xc0] sm:$0xff]
  %v288 = vld [vmem:[%s274 + $0xd0] sm:$0xff]
  %v289 = vld [vmem:[%s274 + $0xe0] sm:$0xff]
  %v290 = vld [vmem:[%s274 + $0xf0] sm:$0xff]
  %291 = vadd.xlane.f32.xlu0 %v275
  %v292 = vpop.xlane.xlu0 %291
  %293 = vadd.xlane.f32.xlu0 %v276
  %v294 = vpop.xlane.xlu0 %293
  %295 = vadd.xlane.f32.xlu0 %v277
  %v296 = vpop.xlane.xlu0 %295
  %297 = vadd.xlane.f32.xlu0 %v278
  %v298 = vpop.xlane.xlu0 %297
  %299 = vadd.xlane.f32.xlu0 %v279
  %v300 = vpop.xlane.xlu0 %299
  %301 = vadd.xlane.f32.xlu0 %v280
  %v302 = vpop.xlane.xlu0 %301
  %303 = vadd.xlane.f32.xlu0 %v281
  %v304 = vpop.xlane.xlu0 %303
  %305 = vadd.xlane.f32.xlu0 %v282
  %v306 = vpop.xlane.xlu0 %305
  %307 = vadd.xlane.f32.xlu0 %v283
  %v308 = vpop.xlane.xlu0 %307
  %309 = vadd.xlane.f32.xlu0 %v284
  %v310 = vpop.xlane.xlu0 %309
  %311 = vadd.xlane.f32.xlu0 %v285
  %v312 = vpop.xlane.xlu0 %311
  %313 = vadd.xlane.f32.xlu0 %v286
  %v314 = vpop.xlane.xlu0 %313
  %315 = vadd.xlane.f32.xlu0 %v287
  %v316 = vpop.xlane.xlu0 %315
  %317 = vadd.xlane.f32.xlu0 %v288
  %v318 = vpop.xlane.xlu0 %317
  %319 = vadd.xlane.f32.xlu0 %v289
  %v320 = vpop.xlane.xlu0 %319
  %321 = vadd.xlane.f32.xlu0 %v290
  %v322 = vpop.xlane.xlu0 %321
  %v323 = vadd.f32 %v292, 0.0
  %v324 = vadd.f32 %v294, 0.0
  %v325 = vadd.f32 %v296, 0.0
  %v326 = vadd.f32 %v298, 0.0
  %v327 = vadd.f32 %v300, 0.0
  %v328 = vadd.f32 %v302, 0.0
  %v329 = vadd.f32 %v304, 0.0
  %v330 = vadd.f32 %v306, 0.0
  %v331 = vadd.f32 %v308, 0.0
  %v332 = vadd.f32 %v310, 0.0
  %v333 = vadd.f32 %v312, 0.0
  %v334 = vadd.f32 %v314, 0.0
  %v335 = vadd.f32 %v316, 0.0
  %v336 = vadd.f32 %v318, 0.0
  %v337 = vadd.f32 %v320, 0.0
  %v338 = vadd.f32 %v322, 0.0
  %339 = vmax.xlane.f32.xlu0 %v275
  %v340 = vpop.xlane.xlu0 %339
  %341 = vmax.xlane.f32.xlu0 %v276
  %v342 = vpop.xlane.xlu0 %341
  %343 = vmax.xlane.f32.xlu0 %v277
  %v344 = vpop.xlane.xlu0 %343
  %345 = vmax.xlane.f32.xlu0 %v278
  %v346 = vpop.xlane.xlu0 %345
  %347 = vmax.xlane.f32.xlu0 %v279
  %v348 = vpop.xlane.xlu0 %347
  %349 = vmax.xlane.f32.xlu0 %v280
  %v350 = vpop.xlane.xlu0 %349
  %351 = vmax.xlane.f32.xlu0 %v281
  %v352 = vpop.xlane.xlu0 %351
  %353 = vmax.xlane.f32.xlu0 %v282
  %v354 = vpop.xlane.xlu0 %353
  %355 = vmax.xlane.f32.xlu0 %v283
  %v356 = vpop.xlane.xlu0 %355
  %357 = vmax.xlane.f32.xlu0 %v284
  %v358 = vpop.xlane.xlu0 %357
  %359 = vmax.xlane.f32.xlu0 %v285
  %v360 = vpop.xlane.xlu0 %359
  %361 = vmax.xlane.f32.xlu0 %v286
  %v362 = vpop.xlane.xlu0 %361
  %363 = vmax.xlane.f32.xlu0 %v287
  %v364 = vpop.xlane.xlu0 %363
  %365 = vmax.xlane.f32.xlu0 %v288
  %v366 = vpop.xlane.xlu0 %365
  %367 = vmax.xlane.f32.xlu0 %v289
  %v368 = vpop.xlane.xlu0 %367
  %369 = vmax.xlane.f32.xlu0 %v290
  %v370 = vpop.xlane.xlu0 %369
  %v371 = vld [vmem:[%s274 + $0x8] sm:$0xff]
  %v372 = vld [vmem:[%s274 + $0x18] sm:$0xff]
  %v373 = vld [vmem:[%s274 + $0x28] sm:$0xff]
  %v374 = vld [vmem:[%s274 + $0x38] sm:$0xff]
  %v375 = vld [vmem:[%s274 + $0x48] sm:$0xff]
  %v376 = vld [vmem:[%s274 + $0x58] sm:$0xff]
  %v377 = vld [vmem:[%s274 + $0x68] sm:$0xff]
  %v378 = vld [vmem:[%s274 + $0x78] sm:$0xff]
  %v379 = vld [vmem:[%s274 + $0x88] sm:$0xff]
  %v380 = vld [vmem:[%s274 + $0x98] sm:$0xff]
  %v381 = vld [vmem:[%s274 + $0xa8] sm:$0xff]
  %v382 = vld [vmem:[%s274 + $0xb8] sm:$0xff]
  %v383 = vld [vmem:[%s274 + $0xc8] sm:$0xff]
  %v384 = vld [vmem:[%s274 + $0xd8] sm:$0xff]
  %v385 = vld [vmem:[%s274 + $0xe8] sm:$0xff]
  %v386 = vld [vmem:[%s274 + $0xf8] sm:$0xff]
  %387 = vadd.xlane.f32.xlu0 %v371
  %v388 = vpop.xlane.xlu0 %387
  %389 = vadd.xlane.f32.xlu0 %v372
  %v390 = vpop.xlane.xlu0 %389
  %391 = vadd.xlane.f32.xlu0 %v373
  %v392 = vpop.xlane.xlu0 %391
  %393 = vadd.xlane.f32.xlu0 %v374
  %v394 = vpop.xlane.xlu0 %393
  %395 = vadd.xlane.f32.xlu0 %v375
  %v396 = vpop.xlane.xlu0 %395
  %397 = vadd.xlane.f32.xlu0 %v376
  %v398 = vpop.xlane.xlu0 %397
  %399 = vadd.xlane.f32.xlu0 %v377
  %v400 = vpop.xlane.xlu0 %399
  %401 = vadd.xlane.f32.xlu0 %v378
  %v402 = vpop.xlane.xlu0 %401
  %403 = vadd.xlane.f32.xlu0 %v379
  %v404 = vpop.xlane.xlu0 %403
  %405 = vadd.xlane.f32.xlu0 %v380
  %v406 = vpop.xlane.xlu0 %405
  %407 = vadd.xlane.f32.xlu0 %v381
  %v408 = vpop.xlane.xlu0 %407
  %409 = vadd.xlane.f32.xlu0 %v382
  %v410 = vpop.xlane.xlu0 %409
  %411 = vadd.xlane.f32.xlu0 %v383
  %v412 = vpop.xlane.xlu0 %411
  %413 = vadd.xlane.f32.xlu0 %v384
  %v414 = vpop.xlane.xlu0 %413
  %415 = vadd.xlane.f32.xlu0 %v385
  %v416 = vpop.xlane.xlu0 %415
  %417 = vadd.xlane.f32.xlu0 %v386
  %v418 = vpop.xlane.xlu0 %417
  %v419 = vadd.f32 %v323, %v388
  %v420 = vadd.f32 %v324, %v390
  %v421 = vadd.f32 %v325, %v392
  %v422 = vadd.f32 %v326, %v394
  %v423 = vadd.f32 %v327, %v396
  %v424 = vadd.f32 %v328, %v398
  %v425 = vadd.f32 %v329, %v400
  %v426 = vadd.f32 %v330, %v402
  %v427 = vadd.f32 %v331, %v404
  %v428 = vadd.f32 %v332, %v406
  %v429 = vadd.f32 %v333, %v408
  %v430 = vadd.f32 %v334, %v410
  %v431 = vadd.f32 %v335, %v412
  %v432 = vadd.f32 %v336, %v414
  %v433 = vadd.f32 %v337, %v416
  %v434 = vadd.f32 %v338, %v418
  %435 = vmax.xlane.f32.xlu0 %v371
  %v436 = vpop.xlane.xlu0 %435
  %437 = vmax.xlane.f32.xlu0 %v372
  %v438 = vpop.xlane.xlu0 %437
  %439 = vmax.xlane.f32.xlu0 %v373
  %v440 = vpop.xlane.xlu0 %439
  %441 = vmax.xlane.f32.xlu0 %v374
  %v442 = vpop.xlane.xlu0 %441
  %443 = vmax.xlane.f32.xlu0 %v375
  %v444 = vpop.xlane.xlu0 %443
  %445 = vmax.xlane.f32.xlu0 %v376
  %v446 = vpop.xlane.xlu0 %445
  %447 = vmax.xlane.f32.xlu0 %v377
  %v448 = vpop.xlane.xlu0 %447
  %449 = vmax.xlane.f32.xlu0 %v378
  %v450 = vpop.xlane.xlu0 %449
  %451 = vmax.xlane.f32.xlu0 %v379
  %v452 = vpop.xlane.xlu0 %451
  %453 = vmax.xlane.f32.xlu0 %v380
  %v454 = vpop.xlane.xlu0 %453
  %455 = vmax.xlane.f32.xlu0 %v381
  %v456 = vpop.xlane.xlu0 %455
  %457 = vmax.xlane.f32.xlu0 %v382
  %v458 = vpop.xlane.xlu0 %457
  %459 = vmax.xlane.f32.xlu0 %v383
  %v460 = vpop.xlane.xlu0 %459
  %461 = vmax.xlane.f32.xlu0 %v384
  %v462 = vpop.xlane.xlu0 %461
  %463 = vmax.xlane.f32.xlu0 %v385
  %v464 = vpop.xlane.xlu0 %463
  %465 = vmax.xlane.f32.xlu0 %v386
  %v466 = vpop.xlane.xlu0 %465
  %v467 = vmax.f32 %v340, %v436
  %v468 = vmax.f32 %v342, %v438
  %v469 = vmax.f32 %v344, %v440
  %v470 = vmax.f32 %v346, %v442
  %v471 = vmax.f32 %v348, %v444
  %v472 = vmax.f32 %v350, %v446
  %v473 = vmax.f32 %v352, %v448
  %v474 = vmax.f32 %v354, %v450
  %v475 = vmax.f32 %v356, %v452
  %v476 = vmax.f32 %v358, %v454
  %v477 = vmax.f32 %v360, %v456
  %v478 = vmax.f32 %v362, %v458
  %v479 = vmax.f32 %v364, %v460
  %v480 = vmax.f32 %v366, %v462
  %v481 = vmax.f32 %v368, %v464
  %v482 = vmax.f32 %v370, %v466
  %vm483 = vcmp.eq.s32.totalorder %v15, 1
  %v484 = vmul.f32 %v419, 0.00390625
  %v485 = vmul.f32 %v420, 0.00390625
  %v486 = vmul.f32 %v421, 0.00390625
  %v487 = vmul.f32 %v422, 0.00390625
  %v488 = vmul.f32 %v423, 0.00390625
  %v489 = vmul.f32 %v424, 0.00390625
  %v490 = vmul.f32 %v425, 0.00390625
  %v491 = vmul.f32 %v426, 0.00390625
  %v492 = vmul.f32 %v427, 0.00390625
  %v493 = vmul.f32 %v428, 0.00390625
  %v494 = vmul.f32 %v429, 0.00390625
  %v495 = vmul.f32 %v430, 0.00390625
  %v496 = vmul.f32 %v431, 0.00390625
  %v497 = vmul.f32 %v432, 0.00390625
  %v498 = vmul.f32 %v433, 0.00390625
  %v499 = vmul.f32 %v434, 0.00390625
  %v500 = vsel %vm483, %v484, %v258
  %v501 = vsel %vm483, %v485, %v259
  %v502 = vsel %vm483, %v486, %v260
  %v503 = vsel %vm483, %v487, %v261
  %v504 = vsel %vm483, %v488, %v262
  %v505 = vsel %vm483, %v489, %v263
  %v506 = vsel %vm483, %v490, %v264
  %v507 = vsel %vm483, %v491, %v265
  %v508 = vsel %vm483, %v492, %v266
  %v509 = vsel %vm483, %v493, %v267
  %v510 = vsel %vm483, %v494, %v268
  %v511 = vsel %vm483, %v495, %v269
  %v512 = vsel %vm483, %v496, %v270
  %v513 = vsel %vm483, %v497, %v271
  %v514 = vsel %vm483, %v498, %v272
  %v515 = vsel %vm483, %v499, %v273
  %vm516 = vcmp.eq.s32.totalorder %v15, 3
  %v517 = vsel %vm516, %v467, %v500
  %v518 = vsel %vm516, %v468, %v501
  %v519 = vsel %vm516, %v469, %v502
  %v520 = vsel %vm516, %v470, %v503
  %v521 = vsel %vm516, %v471, %v504
  %v522 = vsel %vm516, %v472, %v505
  %v523 = vsel %vm516, %v473, %v506
  %v524 = vsel %vm516, %v474, %v507
  %v525 = vsel %vm516, %v475, %v508
  %v526 = vsel %vm516, %v476, %v509
  %v527 = vsel %vm516, %v477, %v510
  %v528 = vsel %vm516, %v478, %v511
  %v529 = vsel %vm516, %v479, %v512
  %v530 = vsel %vm516, %v480, %v513
  %v531 = vsel %vm516, %v481, %v514
  %v532 = vsel %vm516, %v482, %v515
  %v533 = vld [vmem:[%s1] sm:$0xff]
  %v534 = vld [vmem:[%s1 + $0x8] sm:$0xff]
  %v535 = vld [vmem:[%s1 + $0x10] sm:$0xff]
  %v536 = vld [vmem:[%s1 + $0x18] sm:$0xff]
  %v537 = vld [vmem:[%s1 + $0x20] sm:$0xff]
  %v538 = vld [vmem:[%s1 + $0x28] sm:$0xff]
  %v539 = vld [vmem:[%s1 + $0x30] sm:$0xff]
  %v540 = vld [vmem:[%s1 + $0x38] sm:$0xff]
  %v541 = vld [vmem:[%s1 + $0x40] sm:$0xff]
  %v542 = vld [vmem:[%s1 + $0x48] sm:$0xff]
  %v543 = vld [vmem:[%s1 + $0x50] sm:$0xff]
  %v544 = vld [vmem:[%s1 + $0x58] sm:$0xff]
  %v545 = vld [vmem:[%s1 + $0x60] sm:$0xff]
  %v546 = vld [vmem:[%s1 + $0x68] sm:$0xff]
  %v547 = vld [vmem:[%s1 + $0x70] sm:$0xff]
  %v548 = vld [vmem:[%s1 + $0x78] sm:$0xff]
  %v549 = vld [vmem:[%s1 + $0x80] sm:$0xff]
  %v550 = vld [vmem:[%s1 + $0x8] sm:$0xff]
  %552 = vset.pattern.permute.xlu0 9
  %553 = vperm.xlu0 %552, %v550
  %v554 = vpop.permute.xlu0 %553
  %556 = vmatpush.msra.mxu0 %v532
  %557 = vmatpush.msra.mxu0 %v531
  %558 = vmatpush.msra.mxu0 %v530
  %559 = vmatpush.msra.mxu0 %v529
  %560 = vmatpush.msra.mxu0 %v528
  %561 = vmatpush.msra.mxu0 %v527
  %562 = vmatpush.msra.mxu0 %v526
  %563 = vmatpush.msra.mxu0 %v525
  %564 = vmatpush.msra.mxu0 %v524
  %565 = vmatpush.msra.mxu0 %v523
  %566 = vmatpush.msra.mxu0 %v522
  %567 = vmatpush.msra.mxu0 %v521
  %568 = vmatpush.msra.mxu0 %v520
  %569 = vmatpush.msra.mxu0 %v519
  %570 = vmatpush.msra.mxu0 %v518
  %571 = vmatpush.msra.mxu0 %v517
  %572 = vmatmul.f32.gmra.mxu0 %v533
  %v573 = vpop.f32.mrf.mxu0
  %v574 = vadd.f32 %v554, %v573
  %575 = vdwg.mxu0
  %v576 = vmax.f32 %v574, 0.0
  %578 = vset.pattern.permute.xlu0 8
  %579 = vperm.xlu0 %578, %v534
  %v580 = vpop.permute.xlu0 %579
  %583 = vset.pattern.permute.xlu0 8
  %584 = vperm.xlu0 %583, %v535
  %v585 = vpop.permute.xlu0 %584
  %588 = vset.pattern.permute.xlu0 8
  %589 = vperm.xlu0 %588, %v536
  %v590 = vpop.permute.xlu0 %589
  %593 = vset.pattern.permute.xlu0 8
  %594 = vperm.xlu0 %593, %v537
  %v595 = vpop.permute.xlu0 %594
  %598 = vset.pattern.permute.xlu0 8
  %599 = vperm.xlu0 %598, %v538
  %v600 = vpop.permute.xlu0 %599
  %603 = vset.pattern.permute.xlu0 8
  %604 = vperm.xlu0 %603, %v539
  %v605 = vpop.permute.xlu0 %604
  %608 = vset.pattern.permute.xlu0 8
  %609 = vperm.xlu0 %608, %v540
  %v610 = vpop.permute.xlu0 %609
  %613 = vset.pattern.permute.xlu0 8
  %614 = vperm.xlu0 %613, %v541
  %v615 = vpop.permute.xlu0 %614
  %618 = vset.pattern.permute.xlu0 8
  %619 = vperm.xlu0 %618, %v542
  %v620 = vpop.permute.xlu0 %619
  %623 = vset.pattern.permute.xlu0 8
  %624 = vperm.xlu0 %623, %v543
  %v625 = vpop.permute.xlu0 %624
  %628 = vset.pattern.permute.xlu0 8
  %629 = vperm.xlu0 %628, %v544
  %v630 = vpop.permute.xlu0 %629
  %633 = vset.pattern.permute.xlu0 8
  %634 = vperm.xlu0 %633, %v545
  %v635 = vpop.permute.xlu0 %634
  %638 = vset.pattern.permute.xlu0 8
  %639 = vperm.xlu0 %638, %v546
  %v640 = vpop.permute.xlu0 %639
  %643 = vset.pattern.permute.xlu0 8
  %644 = vperm.xlu0 %643, %v547
  %v645 = vpop.permute.xlu0 %644
  %648 = vset.pattern.permute.xlu0 8
  %649 = vperm.xlu0 %648, %v548
  %v650 = vpop.permute.xlu0 %649
  %653 = vset.pattern.permute.xlu0 8
  %654 = vperm.xlu0 %653, %v549
  %v655 = vpop.permute.xlu0 %654
  %vm657 = vcmask 64512
  %v658 = vsel %vm657, %v534, 0
  %v660 = vsel %vm657, %v535, 0
  %v662 = vsel %vm657, %v536, 0
  %v664 = vsel %vm657, %v537, 0
  %v666 = vsel %vm657, %v538, 0
  %v668 = vsel %vm657, %v539, 0
  %v670 = vsel %vm657, %v540, 0
  %v672 = vsel %vm657, %v541, 0
  %v674 = vsel %vm657, %v542, 0
  %v676 = vsel %vm657, %v543, 0
  %v678 = vsel %vm657, %v544, 0
  %v680 = vsel %vm657, %v545, 0
  %v682 = vsel %vm657, %v546, 0
  %v684 = vsel %vm657, %v547, 0
  %v686 = vsel %vm657, %v548, 0
  %v688 = vsel %vm657, %v549, 0
  %690 = vmatpush.msra.mxu0 0.0
  %691 = vmatpush.msra.mxu0 0.0
  %692 = vmatpush.msra.mxu0 0.0
  %693 = vmatpush.msra.mxu0 0.0
  %694 = vmatpush.msra.mxu0 0.0
  %695 = vmatpush.msra.mxu0 0.0
  %696 = vmatpush.msra.mxu0 0.0
  %697 = vmatpush.msra.mxu0 0.0
  %698 = vmatpush.msra.mxu0 0.0
  %699 = vmatpush.msra.mxu0 0.0
  %700 = vmatpush.msra.mxu0 0.0
  %701 = vmatpush.msra.mxu0 0.0
  %702 = vmatpush.msra.mxu0 0.0
  %703 = vmatpush.msra.mxu0 0.0
  %704 = vmatpush.msra.mxu0 0.0
  %705 = vmatpush.msra.mxu0 %v576
  %706 = vmatmul.f32.gmra.mxu0 %v658
  %v707 = vpop.f32.mrf.mxu0
  %v708 = vadd.f32 %v580, %v707
  %709 = vmatmul.f32.gmra.mxu0 %v660
  %v710 = vpop.f32.mrf.mxu0
  %v711 = vadd.f32 %v585, %v710
  %712 = vmatmul.f32.gmra.mxu0 %v662
  %v713 = vpop.f32.mrf.mxu0
  %v714 = vadd.f32 %v590, %v713
  %715 = vmatmul.f32.gmra.mxu0 %v664
  %v716 = vpop.f32.mrf.mxu0
  %v717 = vadd.f32 %v595, %v716
  %718 = vmatmul.f32.gmra.mxu0 %v666
  %v719 = vpop.f32.mrf.mxu0
  %v720 = vadd.f32 %v600, %v719
  %721 = vmatmul.f32.gmra.mxu0 %v668
  %v722 = vpop.f32.mrf.mxu0
  %v723 = vadd.f32 %v605, %v722
  %724 = vmatmul.f32.gmra.mxu0 %v670
  %v725 = vpop.f32.mrf.mxu0
  %v726 = vadd.f32 %v610, %v725
  %727 = vmatmul.f32.gmra.mxu0 %v672
  %v728 = vpop.f32.mrf.mxu0
  %v729 = vadd.f32 %v615, %v728
  %730 = vmatmul.f32.gmra.mxu0 %v674
  %v731 = vpop.f32.mrf.mxu0
  %v732 = vadd.f32 %v620, %v731
  %733 = vmatmul.f32.gmra.mxu0 %v676
  %v734 = vpop.f32.mrf.mxu0
  %v735 = vadd.f32 %v625, %v734
  %736 = vmatmul.f32.gmra.mxu0 %v678
  %v737 = vpop.f32.mrf.mxu0
  %v738 = vadd.f32 %v630, %v737
  %739 = vmatmul.f32.gmra.mxu0 %v680
  %v740 = vpop.f32.mrf.mxu0
  %v741 = vadd.f32 %v635, %v740
  %742 = vmatmul.f32.gmra.mxu0 %v682
  %v743 = vpop.f32.mrf.mxu0
  %v744 = vadd.f32 %v640, %v743
  %745 = vmatmul.f32.gmra.mxu0 %v684
  %v746 = vpop.f32.mrf.mxu0
  %v747 = vadd.f32 %v645, %v746
  %748 = vmatmul.f32.gmra.mxu0 %v686
  %v749 = vpop.f32.mrf.mxu0
  %v750 = vadd.f32 %v650, %v749
  %751 = vmatmul.f32.gmra.mxu0 %v688
  %v752 = vpop.f32.mrf.mxu0
  %v753 = vadd.f32 %v655, %v752
  %754 = vdwg.mxu0
  %771 = vrot.lane.b32.xlu0 %v708, 126
  %v772 = vpop.permute.xlu0 %771
  %773 = vrot.lane.b32.xlu0 %v711, 126
  %v774 = vpop.permute.xlu0 %773
  %775 = vrot.lane.b32.xlu0 %v714, 126
  %v776 = vpop.permute.xlu0 %775
  %777 = vrot.lane.b32.xlu0 %v717, 126
  %v778 = vpop.permute.xlu0 %777
  %779 = vrot.lane.b32.xlu0 %v720, 126
  %v780 = vpop.permute.xlu0 %779
  %781 = vrot.lane.b32.xlu0 %v723, 126
  %v782 = vpop.permute.xlu0 %781
  %783 = vrot.lane.b32.xlu0 %v726, 126
  %v784 = vpop.permute.xlu0 %783
  %785 = vrot.lane.b32.xlu0 %v729, 126
  %v786 = vpop.permute.xlu0 %785
  %787 = vrot.lane.b32.xlu0 %v732, 126
  %v788 = vpop.permute.xlu0 %787
  %789 = vrot.lane.b32.xlu0 %v735, 126
  %v790 = vpop.permute.xlu0 %789
  %791 = vrot.lane.b32.xlu0 %v738, 126
  %v792 = vpop.permute.xlu0 %791
  %793 = vrot.lane.b32.xlu0 %v741, 126
  %v794 = vpop.permute.xlu0 %793
  %795 = vrot.lane.b32.xlu0 %v744, 126
  %v796 = vpop.permute.xlu0 %795
  %797 = vrot.lane.b32.xlu0 %v747, 126
  %v798 = vpop.permute.xlu0 %797
  %799 = vrot.lane.b32.xlu0 %v750, 126
  %v800 = vpop.permute.xlu0 %799
  %801 = vrot.lane.b32.xlu0 %v753, 126
  %v802 = vpop.permute.xlu0 %801
  %v819 = vadd.f32 %v708, %v772
  %v820 = vadd.f32 %v711, %v774
  %v821 = vadd.f32 %v714, %v776
  %v822 = vadd.f32 %v717, %v778
  %v823 = vadd.f32 %v720, %v780
  %v824 = vadd.f32 %v723, %v782
  %v825 = vadd.f32 %v726, %v784
  %v826 = vadd.f32 %v729, %v786
  %v827 = vadd.f32 %v732, %v788
  %v828 = vadd.f32 %v735, %v790
  %v829 = vadd.f32 %v738, %v792
  %v830 = vadd.f32 %v741, %v794
  %v831 = vadd.f32 %v744, %v796
  %v832 = vadd.f32 %v747, %v798
  %v833 = vadd.f32 %v750, %v800
  %v834 = vadd.f32 %v753, %v802
  %v835 = vxor.u32 %v819, 2147483648
  %v836 = vxor.u32 %v820, 2147483648
  %v837 = vxor.u32 %v821, 2147483648
  %v838 = vxor.u32 %v822, 2147483648
  %v839 = vxor.u32 %v823, 2147483648
  %v840 = vxor.u32 %v824, 2147483648
  %v841 = vxor.u32 %v825, 2147483648
  %v842 = vxor.u32 %v826, 2147483648
  %v843 = vxor.u32 %v827, 2147483648
  %v844 = vxor.u32 %v828, 2147483648
  %v845 = vxor.u32 %v829, 2147483648
  %v846 = vxor.u32 %v830, 2147483648
  %v847 = vxor.u32 %v831, 2147483648
  %v848 = vxor.u32 %v832, 2147483648
  %v849 = vxor.u32 %v833, 2147483648
  %v850 = vxor.u32 %v834, 2147483648
  %v851 = vmul.f32 %v835, 1.442695
  %v852 = vpow.pop %v851
  %v853 = vmul.f32 %v836, 1.442695
  %v854 = vpow.pop %v853
  %v855 = vmul.f32 %v837, 1.442695
  %v856 = vpow.pop %v855
  %v857 = vmul.f32 %v838, 1.442695
  %v858 = vpow.pop %v857
  %v859 = vmul.f32 %v839, 1.442695
  %v860 = vpow.pop %v859
  %v861 = vmul.f32 %v840, 1.442695
  %v862 = vpow.pop %v861
  %v863 = vmul.f32 %v841, 1.442695
  %v864 = vpow.pop %v863
  %v865 = vmul.f32 %v842, 1.442695
  %v866 = vpow.pop %v865
  %v867 = vmul.f32 %v843, 1.442695
  %v868 = vpow.pop %v867
  %v869 = vmul.f32 %v844, 1.442695
  %v870 = vpow.pop %v869
  %v871 = vmul.f32 %v845, 1.442695
  %v872 = vpow.pop %v871
  %v873 = vmul.f32 %v846, 1.442695
  %v874 = vpow.pop %v873
  %v875 = vmul.f32 %v847, 1.442695
  %v876 = vpow.pop %v875
  %v877 = vmul.f32 %v848, 1.442695
  %v878 = vpow.pop %v877
  %v879 = vmul.f32 %v849, 1.442695
  %v880 = vpow.pop %v879
  %v881 = vmul.f32 %v850, 1.442695
  %v882 = vpow.pop %v881
  %v883 = vadd.f32 %v852, 1.0
  %v884 = vadd.f32 %v854, 1.0
  %v885 = vadd.f32 %v856, 1.0
  %v886 = vadd.f32 %v858, 1.0
  %v887 = vadd.f32 %v860, 1.0
  %v888 = vadd.f32 %v862, 1.0
  %v889 = vadd.f32 %v864, 1.0
  %v890 = vadd.f32 %v866, 1.0
  %v891 = vadd.f32 %v868, 1.0
  %v892 = vadd.f32 %v870, 1.0
  %v893 = vadd.f32 %v872, 1.0
  %v894 = vadd.f32 %v874, 1.0
  %v895 = vadd.f32 %v876, 1.0
  %v896 = vadd.f32 %v878, 1.0
  %v897 = vadd.f32 %v880, 1.0
  %v898 = vadd.f32 %v882, 1.0
  %v899 = vrcp.pop %v883
  %v900 = vmul.f32 %v883, %v899
  %v901 = vsub.f32 1.0, %v900
  %v902 = vmul.f32 %v899, %v901
  %v903 = vadd.f32 %v899, %v902
  %vm904 = vweird.f32 %v883
  %vm905 = vweird.f32 %v899
  %vm906 = vmor %vm904, %vm905
  %v907 = vsel %vm906, %v899, %v903
  %v908 = vand.u32 2147483647, %v883
  %vm909 = vcmp.eq.f32.partialorder %v908, 8.507059e+37
  %v910 = vand.u32 %v883, 2147483648
  %v911 = vor.u32 1.1754944e-38, %v910
  %v912 = vsel %vm909, %v911, %v907
  %v913 = vmul.f32 1.0, %v912
  %v914 = vrcp.pop %v884
  %v915 = vmul.f32 %v884, %v914
  %v916 = vsub.f32 1.0, %v915
  %v917 = vmul.f32 %v914, %v916
  %v918 = vadd.f32 %v914, %v917
  %vm919 = vweird.f32 %v884
  %vm920 = vweird.f32 %v914
  %vm921 = vmor %vm919, %vm920
  %v922 = vsel %vm921, %v914, %v918
  %v923 = vand.u32 2147483647, %v884
  %vm924 = vcmp.eq.f32.partialorder %v923, 8.507059e+37
  %v925 = vand.u32 %v884, 2147483648
  %v926 = vor.u32 1.1754944e-38, %v925
  %v927 = vsel %vm924, %v926, %v922
  %v928 = vmul.f32 1.0, %v927
  %v929 = vrcp.pop %v885
  %v930 = vmul.f32 %v885, %v929
  %v931 = vsub.f32 1.0, %v930
  %v932 = vmul.f32 %v929, %v931
  %v933 = vadd.f32 %v929, %v932
  %vm934 = vweird.f32 %v885
  %vm935 = vweird.f32 %v929
  %vm936 = vmor %vm934, %vm935
  %v937 = vsel %vm936, %v929, %v933
  %v938 = vand.u32 2147483647, %v885
  %vm939 = vcmp.eq.f32.partialorder %v938, 8.507059e+37
  %v940 = vand.u32 %v885, 2147483648
  %v941 = vor.u32 1.1754944e-38, %v940
  %v942 = vsel %vm939, %v941, %v937
  %v943 = vmul.f32 1.0, %v942
  %v944 = vrcp.pop %v886
  %v945 = vmul.f32 %v886, %v944
  %v946 = vsub.f32 1.0, %v945
  %v947 = vmul.f32 %v944, %v946
  %v948 = vadd.f32 %v944, %v947
  %vm949 = vweird.f32 %v886
  %vm950 = vweird.f32 %v944
  %vm951 = vmor %vm949, %vm950
  %v952 = vsel %vm951, %v944, %v948
  %v953 = vand.u32 2147483647, %v886
  %vm954 = vcmp.eq.f32.partialorder %v953, 8.507059e+37
  %v955 = vand.u32 %v886, 2147483648
  %v956 = vor.u32 1.1754944e-38, %v955
  %v957 = vsel %vm954, %v956, %v952
  %v958 = vmul.f32 1.0, %v957
  %v959 = vrcp.pop %v887
  %v960 = vmul.f32 %v887, %v959
  %v961 = vsub.f32 1.0, %v960
  %v962 = vmul.f32 %v959, %v961
  %v963 = vadd.f32 %v959, %v962
  %vm964 = vweird.f32 %v887
  %vm965 = vweird.f32 %v959
  %vm966 = vmor %vm964, %vm965
  %v967 = vsel %vm966, %v959, %v963
  %v968 = vand.u32 2147483647, %v887
  %vm969 = vcmp.eq.f32.partialorder %v968, 8.507059e+37
  %v970 = vand.u32 %v887, 2147483648
  %v971 = vor.u32 1.1754944e-38, %v970
  %v972 = vsel %vm969, %v971, %v967
  %v973 = vmul.f32 1.0, %v972
  %v974 = vrcp.pop %v888
  %v975 = vmul.f32 %v888, %v974
  %v976 = vsub.f32 1.0, %v975
  %v977 = vmul.f32 %v974, %v976
  %v978 = vadd.f32 %v974, %v977
  %vm979 = vweird.f32 %v888
  %vm980 = vweird.f32 %v974
  %vm981 = vmor %vm979, %vm980
  %v982 = vsel %vm981, %v974, %v978
  %v983 = vand.u32 2147483647, %v888
  %vm984 = vcmp.eq.f32.partialorder %v983, 8.507059e+37
  %v985 = vand.u32 %v888, 2147483648
  %v986 = vor.u32 1.1754944e-38, %v985
  %v987 = vsel %vm984, %v986, %v982
  %v988 = vmul.f32 1.0, %v987
  %v989 = vrcp.pop %v889
  %v990 = vmul.f32 %v889, %v989
  %v991 = vsub.f32 1.0, %v990
  %v992 = vmul.f32 %v989, %v991
  %v993 = vadd.f32 %v989, %v992
  %vm994 = vweird.f32 %v889
  %vm995 = vweird.f32 %v989
  %vm996 = vmor %vm994, %vm995
  %v997 = vsel %vm996, %v989, %v993
  %v998 = vand.u32 2147483647, %v889
  %vm999 = vcmp.eq.f32.partialorder %v998, 8.507059e+37
  %v1000 = vand.u32 %v889, 2147483648
  %v1001 = vor.u32 1.1754944e-38, %v1000
  %v1002 = vsel %vm999, %v1001, %v997
  %v1003 = vmul.f32 1.0, %v1002
  %v1004 = vrcp.pop %v890
  %v1005 = vmul.f32 %v890, %v1004
  %v1006 = vsub.f32 1.0, %v1005
  %v1007 = vmul.f32 %v1004, %v1006
  %v1008 = vadd.f32 %v1004, %v1007
  %vm1009 = vweird.f32 %v890
  %vm1010 = vweird.f32 %v1004
  %vm1011 = vmor %vm1009, %vm1010
  %v1012 = vsel %vm1011, %v1004, %v1008
  %v1013 = vand.u32 2147483647, %v890
  %vm1014 = vcmp.eq.f32.partialorder %v1013, 8.507059e+37
  %v1015 = vand.u32 %v890, 2147483648
  %v1016 = vor.u32 1.1754944e-38, %v1015
  %v1017 = vsel %vm1014, %v1016, %v1012
  %v1018 = vmul.f32 1.0, %v1017
  %v1019 = vrcp.pop %v891
  %v1020 = vmul.f32 %v891, %v1019
  %v1021 = vsub.f32 1.0, %v1020
  %v1022 = vmul.f32 %v1019, %v1021
  %v1023 = vadd.f32 %v1019, %v1022
  %vm1024 = vweird.f32 %v891
  %vm1025 = vweird.f32 %v1019
  %vm1026 = vmor %vm1024, %vm1025
  %v1027 = vsel %vm1026, %v1019, %v1023
  %v1028 = vand.u32 2147483647, %v891
  %vm1029 = vcmp.eq.f32.partialorder %v1028, 8.507059e+37
  %v1030 = vand.u32 %v891, 2147483648
  %v1031 = vor.u32 1.1754944e-38, %v1030
  %v1032 = vsel %vm1029, %v1031, %v1027
  %v1033 = vmul.f32 1.0, %v1032
  %v1034 = vrcp.pop %v892
  %v1035 = vmul.f32 %v892, %v1034
  %v1036 = vsub.f32 1.0, %v1035
  %v1037 = vmul.f32 %v1034, %v1036
  %v1038 = vadd.f32 %v1034, %v1037
  %vm1039 = vweird.f32 %v892
  %vm1040 = vweird.f32 %v1034
  %vm1041 = vmor %vm1039, %vm1040
  %v1042 = vsel %vm1041, %v1034, %v1038
  %v1043 = vand.u32 2147483647, %v892
  %vm1044 = vcmp.eq.f32.partialorder %v1043, 8.507059e+37
  %v1045 = vand.u32 %v892, 2147483648
  %v1046 = vor.u32 1.1754944e-38, %v1045
  %v1047 = vsel %vm1044, %v1046, %v1042
  %v1048 = vmul.f32 1.0, %v1047
  %v1049 = vrcp.pop %v893
  %v1050 = vmul.f32 %v893, %v1049
  %v1051 = vsub.f32 1.0, %v1050
  %v1052 = vmul.f32 %v1049, %v1051
  %v1053 = vadd.f32 %v1049, %v1052
  %vm1054 = vweird.f32 %v893
  %vm1055 = vweird.f32 %v1049
  %vm1056 = vmor %vm1054, %vm1055
  %v1057 = vsel %vm1056, %v1049, %v1053
  %v1058 = vand.u32 2147483647, %v893
  %vm1059 = vcmp.eq.f32.partialorder %v1058, 8.507059e+37
  %v1060 = vand.u32 %v893, 2147483648
  %v1061 = vor.u32 1.1754944e-38, %v1060
  %v1062 = vsel %vm1059, %v1061, %v1057
  %v1063 = vmul.f32 1.0, %v1062
  %v1064 = vrcp.pop %v894
  %v1065 = vmul.f32 %v894, %v1064
  %v1066 = vsub.f32 1.0, %v1065
  %v1067 = vmul.f32 %v1064, %v1066
  %v1068 = vadd.f32 %v1064, %v1067
  %vm1069 = vweird.f32 %v894
  %vm1070 = vweird.f32 %v1064
  %vm1071 = vmor %vm1069, %vm1070
  %v1072 = vsel %vm1071, %v1064, %v1068
  %v1073 = vand.u32 2147483647, %v894
  %vm1074 = vcmp.eq.f32.partialorder %v1073, 8.507059e+37
  %v1075 = vand.u32 %v894, 2147483648
  %v1076 = vor.u32 1.1754944e-38, %v1075
  %v1077 = vsel %vm1074, %v1076, %v1072
  %v1078 = vmul.f32 1.0, %v1077
  %v1079 = vrcp.pop %v895
  %v1080 = vmul.f32 %v895, %v1079
  %v1081 = vsub.f32 1.0, %v1080
  %v1082 = vmul.f32 %v1079, %v1081
  %v1083 = vadd.f32 %v1079, %v1082
  %vm1084 = vweird.f32 %v895
  %vm1085 = vweird.f32 %v1079
  %vm1086 = vmor %vm1084, %vm1085
  %v1087 = vsel %vm1086, %v1079, %v1083
  %v1088 = vand.u32 2147483647, %v895
  %vm1089 = vcmp.eq.f32.partialorder %v1088, 8.507059e+37
  %v1090 = vand.u32 %v895, 2147483648
  %v1091 = vor.u32 1.1754944e-38, %v1090
  %v1092 = vsel %vm1089, %v1091, %v1087
  %v1093 = vmul.f32 1.0, %v1092
  %v1094 = vrcp.pop %v896
  %v1095 = vmul.f32 %v896, %v1094
  %v1096 = vsub.f32 1.0, %v1095
  %v1097 = vmul.f32 %v1094, %v1096
  %v1098 = vadd.f32 %v1094, %v1097
  %vm1099 = vweird.f32 %v896
  %vm1100 = vweird.f32 %v1094
  %vm1101 = vmor %vm1099, %vm1100
  %v1102 = vsel %vm1101, %v1094, %v1098
  %v1103 = vand.u32 2147483647, %v896
  %vm1104 = vcmp.eq.f32.partialorder %v1103, 8.507059e+37
  %v1105 = vand.u32 %v896, 2147483648
  %v1106 = vor.u32 1.1754944e-38, %v1105
  %v1107 = vsel %vm1104, %v1106, %v1102
  %v1108 = vmul.f32 1.0, %v1107
  %v1109 = vrcp.pop %v897
  %v1110 = vmul.f32 %v897, %v1109
  %v1111 = vsub.f32 1.0, %v1110
  %v1112 = vmul.f32 %v1109, %v1111
  %v1113 = vadd.f32 %v1109, %v1112
  %vm1114 = vweird.f32 %v897
  %vm1115 = vweird.f32 %v1109
  %vm1116 = vmor %vm1114, %vm1115
  %v1117 = vsel %vm1116, %v1109, %v1113
  %v1118 = vand.u32 2147483647, %v897
  %vm1119 = vcmp.eq.f32.partialorder %v1118, 8.507059e+37
  %v1120 = vand.u32 %v897, 2147483648
  %v1121 = vor.u32 1.1754944e-38, %v1120
  %v1122 = vsel %vm1119, %v1121, %v1117
  %v1123 = vmul.f32 1.0, %v1122
  %v1124 = vrcp.pop %v898
  %v1125 = vmul.f32 %v898, %v1124
  %v1126 = vsub.f32 1.0, %v1125
  %v1127 = vmul.f32 %v1124, %v1126
  %v1128 = vadd.f32 %v1124, %v1127
  %vm1129 = vweird.f32 %v898
  %vm1130 = vweird.f32 %v1124
  %vm1131 = vmor %vm1129, %vm1130
  %v1132 = vsel %vm1131, %v1124, %v1128
  %v1133 = vand.u32 2147483647, %v898
  %vm1134 = vcmp.eq.f32.partialorder %v1133, 8.507059e+37
  %v1135 = vand.u32 %v898, 2147483648
  %v1136 = vor.u32 1.1754944e-38, %v1135
  %v1137 = vsel %vm1134, %v1136, %v1132
  %v1138 = vmul.f32 1.0, %v1137
  %1140 = vset.pattern.permute.xlu0 0
  %1141 = vperm.xlu0 %1140, %v913
  %v1142 = vpop.permute.xlu0 %1141
  %1145 = vset.pattern.permute.xlu0 0
  %1146 = vperm.xlu0 %1145, %v928
  %v1147 = vpop.permute.xlu0 %1146
  %1150 = vset.pattern.permute.xlu0 0
  %1151 = vperm.xlu0 %1150, %v943
  %v1152 = vpop.permute.xlu0 %1151
  %1155 = vset.pattern.permute.xlu0 0
  %1156 = vperm.xlu0 %1155, %v958
  %v1157 = vpop.permute.xlu0 %1156
  %1160 = vset.pattern.permute.xlu0 0
  %1161 = vperm.xlu0 %1160, %v973
  %v1162 = vpop.permute.xlu0 %1161
  %1165 = vset.pattern.permute.xlu0 0
  %1166 = vperm.xlu0 %1165, %v988
  %v1167 = vpop.permute.xlu0 %1166
  %1170 = vset.pattern.permute.xlu0 0
  %1171 = vperm.xlu0 %1170, %v1003
  %v1172 = vpop.permute.xlu0 %1171
  %1175 = vset.pattern.permute.xlu0 0
  %1176 = vperm.xlu0 %1175, %v1018
  %v1177 = vpop.permute.xlu0 %1176
  %1180 = vset.pattern.permute.xlu0 0
  %1181 = vperm.xlu0 %1180, %v1033
  %v1182 = vpop.permute.xlu0 %1181
  %1185 = vset.pattern.permute.xlu0 0
  %1186 = vperm.xlu0 %1185, %v1048
  %v1187 = vpop.permute.xlu0 %1186
  %1190 = vset.pattern.permute.xlu0 0
  %1191 = vperm.xlu0 %1190, %v1063
  %v1192 = vpop.permute.xlu0 %1191
  %1195 = vset.pattern.permute.xlu0 0
  %1196 = vperm.xlu0 %1195, %v1078
  %v1197 = vpop.permute.xlu0 %1196
  %1200 = vset.pattern.permute.xlu0 0
  %1201 = vperm.xlu0 %1200, %v1093
  %v1202 = vpop.permute.xlu0 %1201
  %1205 = vset.pattern.permute.xlu0 0
  %1206 = vperm.xlu0 %1205, %v1108
  %v1207 = vpop.permute.xlu0 %1206
  %1210 = vset.pattern.permute.xlu0 0
  %1211 = vperm.xlu0 %1210, %v1123
  %v1212 = vpop.permute.xlu0 %1211
  %1215 = vset.pattern.permute.xlu0 0
  %1216 = vperm.xlu0 %1215, %v1138
  %v1217 = vpop.permute.xlu0 %1216
  %v1219 = vmul.f32 %v16, %v1142
  %v1220 = vmul.f32 %v17, %v1147
  %v1221 = vmul.f32 %v18, %v1152
  %v1222 = vmul.f32 %v19, %v1157
  %v1223 = vmul.f32 %v20, %v1162
  %v1224 = vmul.f32 %v21, %v1167
  %v1225 = vmul.f32 %v22, %v1172
  %v1226 = vmul.f32 %v23, %v1177
  %v1227 = vmul.f32 %v24, %v1182
  %v1228 = vmul.f32 %v25, %v1187
  %v1229 = vmul.f32 %v26, %v1192
  %v1230 = vmul.f32 %v27, %v1197
  %v1231 = vmul.f32 %v28, %v1202
  %v1232 = vmul.f32 %v29, %v1207
  %v1233 = vmul.f32 %v30, %v1212
  %v1234 = vmul.f32 %v31, %v1217
  %v1235 = vmax.f32 %v1219, %v1223
  %v1236 = vmax.f32 %v1220, %v1224
  %v1237 = vmax.f32 %v1221, %v1225
  %v1238 = vmax.f32 %v1222, %v1226
  %v1239 = vmax.f32 %v1235, %v1227
  %v1240 = vmax.f32 %v1236, %v1228
  %v1241 = vmax.f32 %v1237, %v1229
  %v1242 = vmax.f32 %v1238, %v1230
  %v1243 = vmax.f32 %v1239, %v1231
  %v1244 = vmax.f32 %v1240, %v1232
  %v1245 = vmax.f32 %v1241, %v1233
  %v1246 = vmax.f32 %v1242, %v1234
  %v1247 = vmax.f32 %v1243, %v1244
  %v1248 = vmax.f32 %v1245, %v1246
  %v1249 = vmax.f32 %v1247, %v1248
  %v1250 = vrot.slane %v1249, 4
  %v1251 = vmax.f32 %v1249, %v1250
  %v1252 = vrot.slane %v1251, 2
  %v1253 = vmax.f32 %v1251, %v1252
  %v1254 = vrot.slane %v1253, 1
  %v1255 = vmax.f32 %v1253, %v1254
  %1256 = vst [vmem:[#allocation2] sm:$0x1] %v1255
  %v1257 = vadd.f32 %v1219, %v1220
  %v1258 = vadd.f32 %v1257, %v1221
  %v1259 = vadd.f32 %v1258, %v1222
  %v1260 = vadd.f32 %v1259, %v1223
  %v1261 = vadd.f32 %v1260, %v1224
  %v1262 = vadd.f32 %v1261, %v1225
  %v1263 = vadd.f32 %v1262, %v1226
  %v1264 = vadd.f32 %v1263, %v1227
  %v1265 = vadd.f32 %v1264, %v1228
  %v1266 = vadd.f32 %v1265, %v1229
  %v1267 = vadd.f32 %v1266, %v1230
  %v1268 = vadd.f32 %v1267, %v1231
  %v1269 = vadd.f32 %v1268, %v1232
  %v1270 = vadd.f32 %v1269, %v1233
  %v1271 = vadd.f32 %v1270, %v1234
  %v1272 = vrot.slane %v1271, 4
  %v1273 = vadd.f32 %v1271, %v1272
  %v1274 = vrot.slane %v1273, 2
  %v1275 = vadd.f32 %v1273, %v1274
  %v1276 = vrot.slane %v1275, 1
  %v1277 = vadd.f32 %v1275, %v1276
  %v1278 = vrcp.pop 128.0
  %v1279 = vmul.f32 128.0, %v1278
  %v1280 = vsub.f32 1.0, %v1279
  %v1281 = vmul.f32 %v1278, %v1280
  %v1282 = vadd.f32 %v1278, %v1281
  %vm1283 = vweird.f32 %v1278
  %v1284 = vsel %vm1283, %v1278, %v1282
  %v1285 = vmul.f32 %v1277, %v1284
  %1286 = vst [vmem:[#allocation2 + $0x4] sm:$0x1] %v1285
  %v1287 = vld [vmem:[%s0 + $0x8] sm:$0xff]
  %v1288 = vld [vmem:[%s0 + $0x18] sm:$0xff]
  %v1289 = vld [vmem:[%s0 + $0x28] sm:$0xff]
  %v1290 = vld [vmem:[%s0 + $0x38] sm:$0xff]
  %v1291 = vld [vmem:[%s0 + $0x48] sm:$0xff]
  %v1292 = vld [vmem:[%s0 + $0x58] sm:$0xff]
  %v1293 = vld [vmem:[%s0 + $0x68] sm:$0xff]
  %v1294 = vld [vmem:[%s0 + $0x78] sm:$0xff]
  %v1295 = vld [vmem:[%s0 + $0x88] sm:$0xff]
  %v1296 = vld [vmem:[%s0 + $0x98] sm:$0xff]
  %v1297 = vld [vmem:[%s0 + $0xa8] sm:$0xff]
  %v1298 = vld [vmem:[%s0 + $0xb8] sm:$0xff]
  %v1299 = vld [vmem:[%s0 + $0xc8] sm:$0xff]
  %v1300 = vld [vmem:[%s0 + $0xd8] sm:$0xff]
  %v1301 = vld [vmem:[%s0 + $0xe8] sm:$0xff]
  %v1302 = vld [vmem:[%s0 + $0xf8] sm:$0xff]
  %v1303 = vmul.f32 %v1287, %v1142
  %v1304 = vmul.f32 %v1288, %v1147
  %v1305 = vmul.f32 %v1289, %v1152
  %v1306 = vmul.f32 %v1290, %v1157
  %v1307 = vmul.f32 %v1291, %v1162
  %v1308 = vmul.f32 %v1292, %v1167
  %v1309 = vmul.f32 %v1293, %v1172
  %v1310 = vmul.f32 %v1294, %v1177
  %v1311 = vmul.f32 %v1295, %v1182
  %v1312 = vmul.f32 %v1296, %v1187
  %v1313 = vmul.f32 %v1297, %v1192
  %v1314 = vmul.f32 %v1298, %v1197
  %v1315 = vmul.f32 %v1299, %v1202
  %v1316 = vmul.f32 %v1300, %v1207
  %v1317 = vmul.f32 %v1301, %v1212
  %v1318 = vmul.f32 %v1302, %v1217
  %v1319 = vmax.f32 %v1303, %v1307
  %v1320 = vmax.f32 %v1304, %v1308
  %v1321 = vmax.f32 %v1305, %v1309
  %v1322 = vmax.f32 %v1306, %v1310
  %v1323 = vmax.f32 %v1319, %v1311
  %v1324 = vmax.f32 %v1320, %v1312
  %v1325 = vmax.f32 %v1321, %v1313
  %v1326 = vmax.f32 %v1322, %v1314
  %v1327 = vmax.f32 %v1323, %v1315
  %v1328 = vmax.f32 %v1324, %v1316
  %v1329 = vmax.f32 %v1325, %v1317
  %v1330 = vmax.f32 %v1326, %v1318
  %v1331 = vmax.f32 %v1327, %v1328
  %v1332 = vmax.f32 %v1329, %v1330
  %v1333 = vmax.f32 %v1331, %v1332
  %v1334 = vrot.slane %v1333, 4
  %v1335 = vmax.f32 %v1333, %v1334
  %v1336 = vrot.slane %v1335, 2
  %v1337 = vmax.f32 %v1335, %v1336
  %v1338 = vrot.slane %v1337, 1
  %v1339 = vmax.f32 %v1337, %v1338
  %1340 = vst [vmem:[#allocation2 + $0x2] sm:$0x1] %v1339
  %v1341 = vadd.f32 %v1303, %v1304
  %v1342 = vadd.f32 %v1341, %v1305
  %v1343 = vadd.f32 %v1342, %v1306
  %v1344 = vadd.f32 %v1343, %v1307
  %v1345 = vadd.f32 %v1344, %v1308
  %v1346 = vadd.f32 %v1345, %v1309
  %v1347 = vadd.f32 %v1346, %v1310
  %v1348 = vadd.f32 %v1347, %v1311
  %v1349 = vadd.f32 %v1348, %v1312
  %v1350 = vadd.f32 %v1349, %v1313
  %v1351 = vadd.f32 %v1350, %v1314
  %v1352 = vadd.f32 %v1351, %v1315
  %v1353 = vadd.f32 %v1352, %v1316
  %v1354 = vadd.f32 %v1353, %v1317
  %v1355 = vadd.f32 %v1354, %v1318
  %v1356 = vrot.slane %v1355, 4
  %v1357 = vadd.f32 %v1355, %v1356
  %v1358 = vrot.slane %v1357, 2
  %v1359 = vadd.f32 %v1357, %v1358
  %v1360 = vrot.slane %v1359, 1
  %v1361 = vadd.f32 %v1359, %v1360
  %v1362 = vmul.f32 %v1361, %v1284
  %1363 = vst [vmem:[#allocation2 + $0x6] sm:$0x1] %v1362
  %v1364 = vld [vmem:[%s274] sm:$0xff]
  %v1365 = vld [vmem:[%s274 + $0x10] sm:$0xff]
  %v1366 = vld [vmem:[%s274 + $0x20] sm:$0xff]
  %v1367 = vld [vmem:[%s274 + $0x30] sm:$0xff]
  %v1368 = vld [vmem:[%s274 + $0x40] sm:$0xff]
  %v1369 = vld [vmem:[%s274 + $0x50] sm:$0xff]
  %v1370 = vld [vmem:[%s274 + $0x60] sm:$0xff]
  %v1371 = vld [vmem:[%s274 + $0x70] sm:$0xff]
  %v1372 = vld [vmem:[%s274 + $0x80] sm:$0xff]
  %v1373 = vld [vmem:[%s274 + $0x90] sm:$0xff]
  %v1374 = vld [vmem:[%s274 + $0xa0] sm:$0xff]
  %v1375 = vld [vmem:[%s274 + $0xb0] sm:$0xff]
  %v1376 = vld [vmem:[%s274 + $0xc0] sm:$0xff]
  %v1377 = vld [vmem:[%s274 + $0xd0] sm:$0xff]
  %v1378 = vld [vmem:[%s274 + $0xe0] sm:$0xff]
  %v1379 = vld [vmem:[%s274 + $0xf0] sm:$0xff]
  %1380 = vset.pattern.permute.xlu0 1
  %1381 = vperm.xlu0 %1380, %v913
  %v1382 = vpop.permute.xlu0 %1381
  %1384 = vset.pattern.permute.xlu0 1
  %1385 = vperm.xlu0 %1384, %v928
  %v1386 = vpop.permute.xlu0 %1385
  %1388 = vset.pattern.permute.xlu0 1
  %1389 = vperm.xlu0 %1388, %v943
  %v1390 = vpop.permute.xlu0 %1389
  %1392 = vset.pattern.permute.xlu0 1
  %1393 = vperm.xlu0 %1392, %v958
  %v1394 = vpop.permute.xlu0 %1393
  %1396 = vset.pattern.permute.xlu0 1
  %1397 = vperm.xlu0 %1396, %v973
  %v1398 = vpop.permute.xlu0 %1397
  %1400 = vset.pattern.permute.xlu0 1
  %1401 = vperm.xlu0 %1400, %v988
  %v1402 = vpop.permute.xlu0 %1401
  %1404 = vset.pattern.permute.xlu0 1
  %1405 = vperm.xlu0 %1404, %v1003
  %v1406 = vpop.permute.xlu0 %1405
  %1408 = vset.pattern.permute.xlu0 1
  %1409 = vperm.xlu0 %1408, %v1018
  %v1410 = vpop.permute.xlu0 %1409
  %1412 = vset.pattern.permute.xlu0 1
  %1413 = vperm.xlu0 %1412, %v1033
  %v1414 = vpop.permute.xlu0 %1413
  %1416 = vset.pattern.permute.xlu0 1
  %1417 = vperm.xlu0 %1416, %v1048
  %v1418 = vpop.permute.xlu0 %1417
  %1420 = vset.pattern.permute.xlu0 1
  %1421 = vperm.xlu0 %1420, %v1063
  %v1422 = vpop.permute.xlu0 %1421
  %1424 = vset.pattern.permute.xlu0 1
  %1425 = vperm.xlu0 %1424, %v1078
  %v1426 = vpop.permute.xlu0 %1425
  %1428 = vset.pattern.permute.xlu0 1
  %1429 = vperm.xlu0 %1428, %v1093
  %v1430 = vpop.permute.xlu0 %1429
  %1432 = vset.pattern.permute.xlu0 1
  %1433 = vperm.xlu0 %1432, %v1108
  %v1434 = vpop.permute.xlu0 %1433
  %1436 = vset.pattern.permute.xlu0 1
  %1437 = vperm.xlu0 %1436, %v1123
  %v1438 = vpop.permute.xlu0 %1437
  %1440 = vset.pattern.permute.xlu0 1
  %1441 = vperm.xlu0 %1440, %v1138
  %v1442 = vpop.permute.xlu0 %1441
  %v1444 = vmul.f32 %v1364, %v1382
  %v1445 = vmul.f32 %v1365, %v1386
  %v1446 = vmul.f32 %v1366, %v1390
  %v1447 = vmul.f32 %v1367, %v1394
  %v1448 = vmul.f32 %v1368, %v1398
  %v1449 = vmul.f32 %v1369, %v1402
  %v1450 = vmul.f32 %v1370, %v1406
  %v1451 = vmul.f32 %v1371, %v1410
  %v1452 = vmul.f32 %v1372, %v1414
  %v1453 = vmul.f32 %v1373, %v1418
  %v1454 = vmul.f32 %v1374, %v1422
  %v1455 = vmul.f32 %v1375, %v1426
  %v1456 = vmul.f32 %v1376, %v1430
  %v1457 = vmul.f32 %v1377, %v1434
  %v1458 = vmul.f32 %v1378, %v1438
  %v1459 = vmul.f32 %v1379, %v1442
  %v1460 = vmax.f32 %v1444, %v1448
  %v1461 = vmax.f32 %v1445, %v1449
  %v1462 = vmax.f32 %v1446, %v1450
  %v1463 = vmax.f32 %v1447, %v1451
  %v1464 = vmax.f32 %v1460, %v1452
  %v1465 = vmax.f32 %v1461, %v1453
  %v1466 = vmax.f32 %v1462, %v1454
  %v1467 = vmax.f32 %v1463, %v1455
  %v1468 = vmax.f32 %v1464, %v1456
  %v1469 = vmax.f32 %v1465, %v1457
  %v1470 = vmax.f32 %v1466, %v1458
  %v1471 = vmax.f32 %v1467, %v1459
  %v1472 = vmax.f32 %v1468, %v1469
  %v1473 = vmax.f32 %v1470, %v1471
  %v1474 = vmax.f32 %v1472, %v1473
  %v1475 = vrot.slane %v1474, 4
  %v1476 = vmax.f32 %v1474, %v1475
  %v1477 = vrot.slane %v1476, 2
  %v1478 = vmax.f32 %v1476, %v1477
  %v1479 = vrot.slane %v1478, 1
  %v1480 = vmax.f32 %v1478, %v1479
  %1481 = vst [vmem:[#allocation2 + $0x1] sm:$0x1] %v1480
  %v1482 = vadd.f32 %v1444, %v1445
  %v1483 = vadd.f32 %v1482, %v1446
  %v1484 = vadd.f32 %v1483, %v1447
  %v1485 = vadd.f32 %v1484, %v1448
  %v1486 = vadd.f32 %v1485, %v1449
  %v1487 = vadd.f32 %v1486, %v1450
  %v1488 = vadd.f32 %v1487, %v1451
  %v1489 = vadd.f32 %v1488, %v1452
  %v1490 = vadd.f32 %v1489, %v1453
  %v1491 = vadd.f32 %v1490, %v1454
  %v1492 = vadd.f32 %v1491, %v1455
  %v1493 = vadd.f32 %v1492, %v1456
  %v1494 = vadd.f32 %v1493, %v1457
  %v1495 = vadd.f32 %v1494, %v1458
  %v1496 = vadd.f32 %v1495, %v1459
  %v1497 = vrot.slane %v1496, 4
  %v1498 = vadd.f32 %v1496, %v1497
  %v1499 = vrot.slane %v1498, 2
  %v1500 = vadd.f32 %v1498, %v1499
  %v1501 = vrot.slane %v1500, 1
  %v1502 = vadd.f32 %v1500, %v1501
  %v1503 = vmul.f32 %v1502, %v1284
  %1504 = vst [vmem:[#allocation2 + $0x5] sm:$0x1] %v1503
  %v1505 = vld [vmem:[%s274 + $0x8] sm:$0xff]
  %v1506 = vld [vmem:[%s274 + $0x18] sm:$0xff]
  %v1507 = vld [vmem:[%s274 + $0x28] sm:$0xff]
  %v1508 = vld [vmem:[%s274 + $0x38] sm:$0xff]
  %v1509 = vld [vmem:[%s274 + $0x48] sm:$0xff]
  %v1510 = vld [vmem:[%s274 + $0x58] sm:$0xff]
  %v1511 = vld [vmem:[%s274 + $0x68] sm:$0xff]
  %v1512 = vld [vmem:[%s274 + $0x78] sm:$0xff]
  %v1513 = vld [vmem:[%s274 + $0x88] sm:$0xff]
  %v1514 = vld [vmem:[%s274 + $0x98] sm:$0xff]
  %v1515 = vld [vmem:[%s274 + $0xa8] sm:$0xff]
  %v1516 = vld [vmem:[%s274 + $0xb8] sm:$0xff]
  %v1517 = vld [vmem:[%s274 + $0xc8] sm:$0xff]
  %v1518 = vld [vmem:[%s274 + $0xd8] sm:$0xff]
  %v1519 = vld [vmem:[%s274 + $0xe8] sm:$0xff]
  %v1520 = vld [vmem:[%s274 + $0xf8] sm:$0xff]
  %v1521 = vmul.f32 %v1505, %v1382
  %v1522 = vmul.f32 %v1506, %v1386
  %v1523 = vmul.f32 %v1507, %v1390
  %v1524 = vmul.f32 %v1508, %v1394
  %v1525 = vmul.f32 %v1509, %v1398
  %v1526 = vmul.f32 %v1510, %v1402
  %v1527 = vmul.f32 %v1511, %v1406
  %v1528 = vmul.f32 %v1512, %v1410
  %v1529 = vmul.f32 %v1513, %v1414
  %v1530 = vmul.f32 %v1514, %v1418
  %v1531 = vmul.f32 %v1515, %v1422
  %v1532 = vmul.f32 %v1516, %v1426
  %v1533 = vmul.f32 %v1517, %v1430
  %v1534 = vmul.f32 %v1518, %v1434
  %v1535 = vmul.f32 %v1519, %v1438
  %v1536 = vmul.f32 %v1520, %v1442
  %v1537 = vmax.f32 %v1521, %v1525
  %v1538 = vmax.f32 %v1522, %v1526
  %v1539 = vmax.f32 %v1523, %v1527
  %v1540 = vmax.f32 %v1524, %v1528
  %v1541 = vmax.f32 %v1537, %v1529
  %v1542 = vmax.f32 %v1538, %v1530
  %v1543 = vmax.f32 %v1539, %v1531
  %v1544 = vmax.f32 %v1540, %v1532
  %v1545 = vmax.f32 %v1541, %v1533
  %v1546 = vmax.f32 %v1542, %v1534
  %v1547 = vmax.f32 %v1543, %v1535
  %v1548 = vmax.f32 %v1544, %v1536
  %v1549 = vmax.f32 %v1545, %v1546
  %v1550 = vmax.f32 %v1547, %v1548
  %v1551 = vmax.f32 %v1549, %v1550
  %v1552 = vrot.slane %v1551, 4
  %v1553 = vmax.f32 %v1551, %v1552
  %v1554 = vrot.slane %v1553, 2
  %v1555 = vmax.f32 %v1553, %v1554
  %v1556 = vrot.slane %v1555, 1
  %v1557 = vmax.f32 %v1555, %v1556
  %1558 = vst [vmem:[#allocation2 + $0x3] sm:$0x1] %v1557
  %v1559 = vadd.f32 %v1521, %v1522
  %v1560 = vadd.f32 %v1559, %v1523
  %v1561 = vadd.f32 %v1560, %v1524
  %v1562 = vadd.f32 %v1561, %v1525
  %v1563 = vadd.f32 %v1562, %v1526
  %v1564 = vadd.f32 %v1563, %v1527
  %v1565 = vadd.f32 %v1564, %v1528
  %v1566 = vadd.f32 %v1565, %v1529
  %v1567 = vadd.f32 %v1566, %v1530
  %v1568 = vadd.f32 %v1567, %v1531
  %v1569 = vadd.f32 %v1568, %v1532
  %v1570 = vadd.f32 %v1569, %v1533
  %v1571 = vadd.f32 %v1570, %v1534
  %v1572 = vadd.f32 %v1571, %v1535
  %v1573 = vadd.f32 %v1572, %v1536
  %v1574 = vrot.slane %v1573, 4
  %v1575 = vadd.f32 %v1573, %v1574
  %v1576 = vrot.slane %v1575, 2
  %v1577 = vadd.f32 %v1575, %v1576
  %v1578 = vrot.slane %v1577, 1
  %v1579 = vadd.f32 %v1577, %v1578
  %v1580 = vmul.f32 %v1579, %v1284
  %1581 = vst [vmem:[#allocation2 + $0x7] sm:$0x1] %v1580
  %v1582 = vld [vmem:[#allocation2] sm:$0xff]
  %1584 = vst [vmem:[#allocation1] ss:$4 sm:$0xff] %v1582
  %v1585 = vld.sshfl [vmem:[#allocation1] sm:$0xff pattern:$0x73625140]
  %v1586 = vld.sshfl [vmem:[#allocation1 + $0x8] sm:$0xff pattern:$0x73625140]
  %v1587 = vld.sshfl [vmem:[#allocation1 + $0x10] sm:$0xff pattern:$0x73625140]
  %v1588 = vld.sshfl [vmem:[#allocation1 + $0x18] sm:$0xff pattern:$0x73625140]
  %v1593 = vpack.c.bf16 %v1585, %v1585
  %v1594 = vpack.c.bf16 %v1586, %v1586
  %v1595 = vpack.c.bf16 %v1587, %v1587
  %v1596 = vpack.c.bf16 %v1588, %v1588
  %v1597 = vld [vmem:[%s2] sm:$0xff]
  %v1598 = vld [vmem:[%s2 + $0x8] sm:$0xff]
  %v1599 = vld [vmem:[%s2 + $0x10] sm:$0xff]
  %v1600 = vld [vmem:[%s2 + $0x18] sm:$0xff]
  %v1601 = vld [vmem:[%s2 + $0x20] sm:$0xff]
  %v1602 = vld [vmem:[%s2 + $0x28] sm:$0xff]
  %v1603 = vld [vmem:[%s2 + $0x30] sm:$0xff]
  %v1604 = vld [vmem:[%s2 + $0x38] sm:$0xff]
  %v1605 = vld [vmem:[%s2 + $0x40] sm:$0xff]
  %v1606 = vld [vmem:[%s2 + $0x48] sm:$0xff]
  %v1607 = vld [vmem:[%s2 + $0x50] sm:$0xff]
  %v1608 = vld [vmem:[%s2 + $0x58] sm:$0xff]
  %v1609 = vld [vmem:[%s2 + $0x60] sm:$0xff]
  %v1610 = vld [vmem:[%s2 + $0x68] sm:$0xff]
  %v1611 = vld [vmem:[%s2 + $0x70] sm:$0xff]
  %v1612 = vld [vmem:[%s2 + $0x78] sm:$0xff]
  %v1613 = vld [vmem:[%s2 + $0x80] sm:$0xff]
  %v1614 = vld [vmem:[%s2 + $0x88] sm:$0xff]
  %v1615 = vld [vmem:[%s2 + $0x90] sm:$0xff]
  %v1616 = vld [vmem:[%s2 + $0x98] sm:$0xff]
  %v1617 = vld [vmem:[%s2 + $0xa0] sm:$0xff]
  %v1618 = vld [vmem:[%s2 + $0xa8] sm:$0xff]
  %v1619 = vld [vmem:[%s2 + $0xb0] sm:$0xff]
  %v1620 = vld [vmem:[%s2 + $0xb8] sm:$0xff]
  %v1621 = vld [vmem:[%s2 + $0xc0] sm:$0xff]
  %v1622 = vld [vmem:[%s2 + $0xc8] sm:$0xff]
  %v1623 = vld [vmem:[%s2 + $0xd0] sm:$0xff]
  %v1624 = vld [vmem:[%s2 + $0xd8] sm:$0xff]
  %v1625 = vld [vmem:[%s2 + $0xe0] sm:$0xff]
  %v1626 = vld [vmem:[%s2 + $0xe8] sm:$0xff]
  %v1627 = vld [vmem:[%s2 + $0xf0] sm:$0xff]
  %v1628 = vld [vmem:[%s2 + $0xf8] sm:$0xff]
  %v1629 = vld [vmem:[%s2 + $0x100] sm:$0xff]
  %v1630 = vld [vmem:[%s2 + $0x108] sm:$0xff]
  %v1631 = vld [vmem:[%s2 + $0x110] sm:$0xff]
  %v1632 = vld [vmem:[%s2 + $0x118] sm:$0xff]
  %v1633 = vld [vmem:[%s2 + $0x120] sm:$0xff]
  %v1634 = vld [vmem:[%s2 + $0x128] sm:$0xff]
  %v1635 = vld [vmem:[%s2 + $0x130] sm:$0xff]
  %v1636 = vld [vmem:[%s2 + $0x138] sm:$0xff]
  %v1637 = vld [vmem:[%s2 + $0x140] sm:$0xff]
  %v1638 = vld [vmem:[%s2 + $0x148] sm:$0xff]
  %v1639 = vld [vmem:[%s2 + $0x150] sm:$0xff]
  %v1640 = vld [vmem:[%s2 + $0x158] sm:$0xff]
  %v1641 = vld [vmem:[%s2 + $0x160] sm:$0xff]
  %v1642 = vld [vmem:[%s2 + $0x168] sm:$0xff]
  %v1643 = vld [vmem:[%s2 + $0x170] sm:$0xff]
  %v1644 = vld [vmem:[%s2 + $0x178] sm:$0xff]
  %v1645 = vld [vmem:[%s2 + $0x180] sm:$0xff]
  %v1646 = vld [vmem:[%s2 + $0x188] sm:$0xff]
  %v1647 = vld [vmem:[%s2 + $0x190] sm:$0xff]
  %v1648 = vld [vmem:[%s2 + $0x198] sm:$0xff]
  %v1649 = vld [vmem:[%s2 + $0x1a0] sm:$0xff]
  %v1650 = vld [vmem:[%s2 + $0x1a8] sm:$0xff]
  %v1651 = vld [vmem:[%s2 + $0x1b0] sm:$0xff]
  %v1652 = vld [vmem:[%s2 + $0x1b8] sm:$0xff]
  %v1653 = vld [vmem:[%s2 + $0x1c0] sm:$0xff]
  %v1654 = vld [vmem:[%s2 + $0x1c8] sm:$0xff]
  %v1655 = vld [vmem:[%s2 + $0x1d0] sm:$0xff]
  %v1656 = vld [vmem:[%s2 + $0x1d8] sm:$0xff]
  %v1657 = vld [vmem:[%s2 + $0x1e0] sm:$0xff]
  %v1658 = vld [vmem:[%s2 + $0x1e8] sm:$0xff]
  %v1659 = vld [vmem:[%s2 + $0x1f0] sm:$0xff]
  %v1660 = vld [vmem:[%s2 + $0x1f8] sm:$0xff]
  %v1725 = vunpack.c.l.b16 %v1597
  %v1726 = vunpack.c.h.b16 %v1597
  %v1727 = vunpack.c.l.b16 %v1598
  %v1728 = vunpack.c.h.b16 %v1598
  %v1729 = vunpack.c.l.b16 %v1599
  %v1730 = vunpack.c.h.b16 %v1599
  %v1731 = vunpack.c.l.b16 %v1600
  %v1732 = vunpack.c.h.b16 %v1600
  %v1733 = vunpack.c.l.b16 %v1601
  %v1734 = vunpack.c.h.b16 %v1601
  %v1735 = vunpack.c.l.b16 %v1602
  %v1736 = vunpack.c.h.b16 %v1602
  %v1737 = vunpack.c.l.b16 %v1603
  %v1738 = vunpack.c.h.b16 %v1603
  %v1739 = vunpack.c.l.b16 %v1604
  %v1740 = vunpack.c.h.b16 %v1604
  %v1741 = vunpack.c.l.b16 %v1605
  %v1742 = vunpack.c.h.b16 %v1605
  %v1743 = vunpack.c.l.b16 %v1606
  %v1744 = vunpack.c.h.b16 %v1606
  %v1745 = vunpack.c.l.b16 %v1607
  %v1746 = vunpack.c.h.b16 %v1607
  %v1747 = vunpack.c.l.b16 %v1608
  %v1748 = vunpack.c.h.b16 %v1608
  %v1749 = vunpack.c.l.b16 %v1609
  %v1750 = vunpack.c.h.b16 %v1609
  %v1751 = vunpack.c.l.b16 %v1610
  %v1752 = vunpack.c.h.b16 %v1610
  %v1753 = vunpack.c.l.b16 %v1611
  %v1754 = vunpack.c.h.b16 %v1611
  %v1755 = vunpack.c.l.b16 %v1612
  %v1756 = vunpack.c.h.b16 %v1612
  %v1757 = vunpack.c.l.b16 %v1613
  %v1758 = vunpack.c.h.b16 %v1613
  %v1759 = vunpack.c.l.b16 %v1614
  %v1760 = vunpack.c.h.b16 %v1614
  %v1761 = vunpack.c.l.b16 %v1615
  %v1762 = vunpack.c.h.b16 %v1615
  %v1763 = vunpack.c.l.b16 %v1616
  %v1764 = vunpack.c.h.b16 %v1616
  %v1765 = vunpack.c.l.b16 %v1617
  %v1766 = vunpack.c.h.b16 %v1617
  %v1767 = vunpack.c.l.b16 %v1618
  %v1768 = vunpack.c.h.b16 %v1618
  %v1769 = vunpack.c.l.b16 %v1619
  %v1770 = vunpack.c.h.b16 %v1619
  %v1771 = vunpack.c.l.b16 %v1620
  %v1772 = vunpack.c.h.b16 %v1620
  %v1773 = vunpack.c.l.b16 %v1621
  %v1774 = vunpack.c.h.b16 %v1621
  %v1775 = vunpack.c.l.b16 %v1622
  %v1776 = vunpack.c.h.b16 %v1622
  %v1777 = vunpack.c.l.b16 %v1623
  %v1778 = vunpack.c.h.b16 %v1623
  %v1779 = vunpack.c.l.b16 %v1624
  %v1780 = vunpack.c.h.b16 %v1624
  %v1781 = vunpack.c.l.b16 %v1625
  %v1782 = vunpack.c.h.b16 %v1625
  %v1783 = vunpack.c.l.b16 %v1626
  %v1784 = vunpack.c.h.b16 %v1626
  %v1785 = vunpack.c.l.b16 %v1627
  %v1786 = vunpack.c.h.b16 %v1627
  %v1787 = vunpack.c.l.b16 %v1628
  %v1788 = vunpack.c.h.b16 %v1628
  %v1789 = vunpack.c.l.b16 %v1629
  %v1790 = vunpack.c.h.b16 %v1629
  %v1791 = vunpack.c.l.b16 %v1630
  %v1792 = vunpack.c.h.b16 %v1630
  %v1793 = vunpack.c.l.b16 %v1631
  %v1794 = vunpack.c.h.b16 %v1631
  %v1795 = vunpack.c.l.b16 %v1632
  %v1796 = vunpack.c.h.b16 %v1632
  %v1797 = vunpack.c.l.b16 %v1633
  %v1798 = vunpack.c.h.b16 %v1633
  %v1799 = vunpack.c.l.b16 %v1634
  %v1800 = vunpack.c.h.b16 %v1634
  %v1801 = vunpack.c.l.b16 %v1635
  %v1802 = vunpack.c.h.b16 %v1635
  %v1803 = vunpack.c.l.b16 %v1636
  %v1804 = vunpack.c.h.b16 %v1636
  %v1805 = vunpack.c.l.b16 %v1637
  %v1806 = vunpack.c.h.b16 %v1637
  %v1807 = vunpack.c.l.b16 %v1638
  %v1808 = vunpack.c.h.b16 %v1638
  %v1809 = vunpack.c.l.b16 %v1639
  %v1810 = vunpack.c.h.b16 %v1639
  %v1811 = vunpack.c.l.b16 %v1640
  %v1812 = vunpack.c.h.b16 %v1640
  %v1813 = vunpack.c.l.b16 %v1641
  %v1814 = vunpack.c.h.b16 %v1641
  %v1815 = vunpack.c.l.b16 %v1642
  %v1816 = vunpack.c.h.b16 %v1642
  %v1817 = vunpack.c.l.b16 %v1643
  %v1818 = vunpack.c.h.b16 %v1643
  %v1819 = vunpack.c.l.b16 %v1644
  %v1820 = vunpack.c.h.b16 %v1644
  %v1821 = vunpack.c.l.b16 %v1645
  %v1822 = vunpack.c.h.b16 %v1645
  %v1823 = vunpack.c.l.b16 %v1646
  %v1824 = vunpack.c.h.b16 %v1646
  %v1825 = vunpack.c.l.b16 %v1647
  %v1826 = vunpack.c.h.b16 %v1647
  %v1827 = vunpack.c.l.b16 %v1648
  %v1828 = vunpack.c.h.b16 %v1648
  %v1829 = vunpack.c.l.b16 %v1649
  %v1830 = vunpack.c.h.b16 %v1649
  %v1831 = vunpack.c.l.b16 %v1650
  %v1832 = vunpack.c.h.b16 %v1650
  %v1833 = vunpack.c.l.b16 %v1651
  %v1834 = vunpack.c.h.b16 %v1651
  %v1835 = vunpack.c.l.b16 %v1652
  %v1836 = vunpack.c.h.b16 %v1652
  %v1837 = vunpack.c.l.b16 %v1653
  %v1838 = vunpack.c.h.b16 %v1653
  %v1839 = vunpack.c.l.b16 %v1654
  %v1840 = vunpack.c.h.b16 %v1654
  %v1841 = vunpack.c.l.b16 %v1655
  %v1842 = vunpack.c.h.b16 %v1655
  %v1843 = vunpack.c.l.b16 %v1656
  %v1844 = vunpack.c.h.b16 %v1656
  %v1845 = vunpack.c.l.b16 %v1657
  %v1846 = vunpack.c.h.b16 %v1657
  %v1847 = vunpack.c.l.b16 %v1658
  %v1848 = vunpack.c.h.b16 %v1658
  %v1849 = vunpack.c.l.b16 %v1659
  %v1850 = vunpack.c.h.b16 %v1659
  %v1851 = vunpack.c.l.b16 %v1660
  %v1852 = vunpack.c.h.b16 %v1660
  %v1853 = vpack.c.b16 %v1727, %v1725
  %v1854 = vpack.c.b16 %v1728, %v1726
  %v1855 = vpack.c.b16 %v1731, %v1729
  %v1856 = vpack.c.b16 %v1732, %v1730
  %v1857 = vpack.c.b16 %v1735, %v1733
  %v1858 = vpack.c.b16 %v1736, %v1734
  %v1859 = vpack.c.b16 %v1739, %v1737
  %v1860 = vpack.c.b16 %v1740, %v1738
  %v1861 = vpack.c.b16 %v1743, %v1741
  %v1862 = vpack.c.b16 %v1744, %v1742
  %v1863 = vpack.c.b16 %v1747, %v1745
  %v1864 = vpack.c.b16 %v1748, %v1746
  %v1865 = vpack.c.b16 %v1751, %v1749
  %v1866 = vpack.c.b16 %v1752, %v1750
  %v1867 = vpack.c.b16 %v1755, %v1753
  %v1868 = vpack.c.b16 %v1756, %v1754
  %v1869 = vpack.c.b16 %v1759, %v1757
  %v1870 = vpack.c.b16 %v1760, %v1758
  %v1871 = vpack.c.b16 %v1763, %v1761
  %v1872 = vpack.c.b16 %v1764, %v1762
  %v1873 = vpack.c.b16 %v1767, %v1765
  %v1874 = vpack.c.b16 %v1768, %v1766
  %v1875 = vpack.c.b16 %v1771, %v1769
  %v1876 = vpack.c.b16 %v1772, %v1770
  %v1877 = vpack.c.b16 %v1775, %v1773
  %v1878 = vpack.c.b16 %v1776, %v1774
  %v1879 = vpack.c.b16 %v1779, %v1777
  %v1880 = vpack.c.b16 %v1780, %v1778
  %v1881 = vpack.c.b16 %v1783, %v1781
  %v1882 = vpack.c.b16 %v1784, %v1782
  %v1883 = vpack.c.b16 %v1787, %v1785
  %v1884 = vpack.c.b16 %v1788, %v1786
  %v1885 = vpack.c.b16 %v1791, %v1789
  %v1886 = vpack.c.b16 %v1792, %v1790
  %v1887 = vpack.c.b16 %v1795, %v1793
  %v1888 = vpack.c.b16 %v1796, %v1794
  %v1889 = vpack.c.b16 %v1799, %v1797
  %v1890 = vpack.c.b16 %v1800, %v1798
  %v1891 = vpack.c.b16 %v1803, %v1801
  %v1892 = vpack.c.b16 %v1804, %v1802
  %v1893 = vpack.c.b16 %v1807, %v1805
  %v1894 = vpack.c.b16 %v1808, %v1806
  %v1895 = vpack.c.b16 %v1811, %v1809
  %v1896 = vpack.c.b16 %v1812, %v1810
  %v1897 = vpack.c.b16 %v1815, %v1813
  %v1898 = vpack.c.b16 %v1816, %v1814
  %v1899 = vpack.c.b16 %v1819, %v1817
  %v1900 = vpack.c.b16 %v1820, %v1818
  %v1901 = vpack.c.b16 %v1823, %v1821
  %v1902 = vpack.c.b16 %v1824, %v1822
  %v1903 = vpack.c.b16 %v1827, %v1825
  %v1904 = vpack.c.b16 %v1828, %v1826
  %v1905 = vpack.c.b16 %v1831, %v1829
  %v1906 = vpack.c.b16 %v1832, %v1830
  %v1907 = vpack.c.b16 %v1835, %v1833
  %v1908 = vpack.c.b16 %v1836, %v1834
  %v1909 = vpack.c.b16 %v1839, %v1837
  %v1910 = vpack.c.b16 %v1840, %v1838
  %v1911 = vpack.c.b16 %v1843, %v1841
  %v1912 = vpack.c.b16 %v1844, %v1842
  %v1913 = vpack.c.b16 %v1847, %v1845
  %v1914 = vpack.c.b16 %v1848, %v1846
  %v1915 = vpack.c.b16 %v1851, %v1849
  %v1916 = vpack.c.b16 %v1852, %v1850
  %1981 = vmatpush.bf16.msra.mxu0 %v1867
  %1982 = vmatpush.bf16.msra.mxu0 %v1865
  %1983 = vmatpush.bf16.msra.mxu0 %v1863
  %1984 = vmatpush.bf16.msra.mxu0 %v1861
  %1985 = vmatpush.bf16.msra.mxu0 %v1859
  %1986 = vmatpush.bf16.msra.mxu0 %v1857
  %1987 = vmatpush.bf16.msra.mxu0 %v1855
  %1988 = vmatpush.bf16.msra.mxu0 %v1853
  %1989 = vmatmul.bf16.gmra.mxu0 %v1593
  %v1990 = vpop.f32.mrf.mxu0
  %v1991 = vadd.f32 0.0, %v1990
  %v1992 = vpop.f32.mrf.mxu0
  %1993 = vdwg.mxu0
  %1994 = vmatpush.bf16.msra.mxu0 %v1883
  %1995 = vmatpush.bf16.msra.mxu0 %v1881
  %1996 = vmatpush.bf16.msra.mxu0 %v1879
  %1997 = vmatpush.bf16.msra.mxu0 %v1877
  %1998 = vmatpush.bf16.msra.mxu0 %v1875
  %1999 = vmatpush.bf16.msra.mxu0 %v1873
  %2000 = vmatpush.bf16.msra.mxu0 %v1871
  %2001 = vmatpush.bf16.msra.mxu0 %v1869
  %2002 = vmatmul.bf16.gmra.mxu0 %v1594
  %v2003 = vpop.f32.mrf.mxu0
  %v2004 = vadd.f32 %v1991, %v2003
  %v2005 = vpop.f32.mrf.mxu0
  %2006 = vdwg.mxu0
  %2007 = vmatpush.bf16.msra.mxu0 %v1899
  %2008 = vmatpush.bf16.msra.mxu0 %v1897
  %2009 = vmatpush.bf16.msra.mxu0 %v1895
  %2010 = vmatpush.bf16.msra.mxu0 %v1893
  %2011 = vmatpush.bf16.msra.mxu0 %v1891
  %2012 = vmatpush.bf16.msra.mxu0 %v1889
  %2013 = vmatpush.bf16.msra.mxu0 %v1887
  %2014 = vmatpush.bf16.msra.mxu0 %v1885
  %2015 = vmatmul.bf16.gmra.mxu0 %v1595
  %v2016 = vpop.f32.mrf.mxu0
  %v2017 = vadd.f32 %v2004, %v2016
  %v2018 = vpop.f32.mrf.mxu0
  %2019 = vdwg.mxu0
  %2020 = vmatpush.bf16.msra.mxu0 %v1915
  %2021 = vmatpush.bf16.msra.mxu0 %v1913
  %2022 = vmatpush.bf16.msra.mxu0 %v1911
  %2023 = vmatpush.bf16.msra.mxu0 %v1909
  %2024 = vmatpush.bf16.msra.mxu0 %v1907
  %2025 = vmatpush.bf16.msra.mxu0 %v1905
  %2026 = vmatpush.bf16.msra.mxu0 %v1903
  %2027 = vmatpush.bf16.msra.mxu0 %v1901
  %2028 = vmatmul.bf16.gmra.mxu0 %v1596
  %v2029 = vpop.f32.mrf.mxu0
  %v2030 = vadd.f32 %v2017, %v2029
  %v2031 = vpop.f32.mrf.mxu0
  %2032 = vdwg.mxu0
  %2033 = vmatpush.bf16.msra.mxu0 %v1868
  %2034 = vmatpush.bf16.msra.mxu0 %v1866
  %2035 = vmatpush.bf16.msra.mxu0 %v1864
  %2036 = vmatpush.bf16.msra.mxu0 %v1862
  %2037 = vmatpush.bf16.msra.mxu0 %v1860
  %2038 = vmatpush.bf16.msra.mxu0 %v1858
  %2039 = vmatpush.bf16.msra.mxu0 %v1856
  %2040 = vmatpush.bf16.msra.mxu0 %v1854
  %2041 = vmatmul.bf16.gmra.mxu0 %v1593
  %v2042 = vpop.f32.mrf.mxu0
  %v2043 = vadd.f32 0.0, %v2042
  %v2044 = vpop.f32.mrf.mxu0
  %2045 = vdwg.mxu0
  %2046 = vmatpush.bf16.msra.mxu0 %v1884
  %2047 = vmatpush.bf16.msra.mxu0 %v1882
  %2048 = vmatpush.bf16.msra.mxu0 %v1880
  %2049 = vmatpush.bf16.msra.mxu0 %v1878
  %2050 = vmatpush.bf16.msra.mxu0 %v1876
  %2051 = vmatpush.bf16.msra.mxu0 %v1874
  %2052 = vmatpush.bf16.msra.mxu0 %v1872
  %2053 = vmatpush.bf16.msra.mxu0 %v1870
  %2054 = vmatmul.bf16.gmra.mxu0 %v1594
  %v2055 = vpop.f32.mrf.mxu0
  %v2056 = vadd.f32 %v2043, %v2055
  %v2057 = vpop.f32.mrf.mxu0
  %2058 = vdwg.mxu0
  %2059 = vmatpush.bf16.msra.mxu0 %v1900
  %2060 = vmatpush.bf16.msra.mxu0 %v1898
  %2061 = vmatpush.bf16.msra.mxu0 %v1896
  %2062 = vmatpush.bf16.msra.mxu0 %v1894
  %2063 = vmatpush.bf16.msra.mxu0 %v1892
  %2064 = vmatpush.bf16.msra.mxu0 %v1890
  %2065 = vmatpush.bf16.msra.mxu0 %v1888
  %2066 = vmatpush.bf16.msra.mxu0 %v1886
  %2067 = vmatmul.bf16.gmra.mxu0 %v1595
  %v2068 = vpop.f32.mrf.mxu0
  %v2069 = vadd.f32 %v2056, %v2068
  %v2070 = vpop.f32.mrf.mxu0
  %2071 = vdwg.mxu0
  %2072 = vmatpush.bf16.msra.mxu0 %v1916
  %2073 = vmatpush.bf16.msra.mxu0 %v1914
  %2074 = vmatpush.bf16.msra.mxu0 %v1912
  %2075 = vmatpush.bf16.msra.mxu0 %v1910
  %2076 = vmatpush.bf16.msra.mxu0 %v1908
  %2077 = vmatpush.bf16.msra.mxu0 %v1906
  %2078 = vmatpush.bf16.msra.mxu0 %v1904
  %2079 = vmatpush.bf16.msra.mxu0 %v1902
  %2080 = vmatmul.bf16.gmra.mxu0 %v1596
  %v2081 = vpop.f32.mrf.mxu0
  %v2082 = vadd.f32 %v2069, %v2081
  %v2083 = vpop.f32.mrf.mxu0
  %2084 = vdwg.mxu0
  %v2085 = vxor.u32 %v2030, 2147483648
  %v2086 = vxor.u32 %v2082, 2147483648
  %v2087 = vmul.f32 %v2085, 1.442695
  %v2088 = vpow.pop %v2087
  %v2089 = vmul.f32 %v2086, 1.442695
  %v2090 = vpow.pop %v2089
  %v2091 = vadd.f32 %v2088, 1.0
  %v2092 = vadd.f32 %v2090, 1.0
  %v2093 = vrcp.pop %v2091
  %v2094 = vmul.f32 %v2091, %v2093
  %v2095 = vsub.f32 1.0, %v2094
  %v2096 = vmul.f32 %v2093, %v2095
  %v2097 = vadd.f32 %v2093, %v2096
  %vm2098 = vweird.f32 %v2091
  %vm2099 = vweird.f32 %v2093
  %vm2100 = vmor %vm2098, %vm2099
  %v2101 = vsel %vm2100, %v2093, %v2097
  %v2102 = vand.u32 2147483647, %v2091
  %vm2103 = vcmp.eq.f32.partialorder %v2102, 8.507059e+37
  %v2104 = vand.u32 %v2091, 2147483648
  %v2105 = vor.u32 1.1754944e-38, %v2104
  %v2106 = vsel %vm2103, %v2105, %v2101
  %v2107 = vmul.f32 1.0, %v2106
  %v2108 = vrcp.pop %v2092
  %v2109 = vmul.f32 %v2092, %v2108
  %v2110 = vsub.f32 1.0, %v2109
  %v2111 = vmul.f32 %v2108, %v2110
  %v2112 = vadd.f32 %v2108, %v2111
  %vm2113 = vweird.f32 %v2092
  %vm2114 = vweird.f32 %v2108
  %vm2115 = vmor %vm2113, %vm2114
  %v2116 = vsel %vm2115, %v2108, %v2112
  %v2117 = vand.u32 2147483647, %v2092
  %vm2118 = vcmp.eq.f32.partialorder %v2117, 8.507059e+37
  %v2119 = vand.u32 %v2092, 2147483648
  %v2120 = vor.u32 1.1754944e-38, %v2119
  %v2121 = vsel %vm2118, %v2120, %v2116
  %v2122 = vmul.f32 1.0, %v2121
  %v2123 = vld [vmem:[%s0] sm:$0xff]
  %v2124 = vld [vmem:[%s0 + $0x10] sm:$0xff]
  %v2125 = vld [vmem:[%s0 + $0x20] sm:$0xff]
  %v2126 = vld [vmem:[%s0 + $0x30] sm:$0xff]
  %v2127 = vld [vmem:[%s0 + $0x40] sm:$0xff]
  %v2128 = vld [vmem:[%s0 + $0x50] sm:$0xff]
  %v2129 = vld [vmem:[%s0 + $0x60] sm:$0xff]
  %v2130 = vld [vmem:[%s0 + $0x70] sm:$0xff]
  %v2131 = vld [vmem:[%s0 + $0x80] sm:$0xff]
  %v2132 = vld [vmem:[%s0 + $0x90] sm:$0xff]
  %v2133 = vld [vmem:[%s0 + $0xa0] sm:$0xff]
  %v2134 = vld [vmem:[%s0 + $0xb0] sm:$0xff]
  %v2135 = vld [vmem:[%s0 + $0xc0] sm:$0xff]
  %v2136 = vld [vmem:[%s0 + $0xd0] sm:$0xff]
  %v2137 = vld [vmem:[%s0 + $0xe0] sm:$0xff]
  %v2138 = vld [vmem:[%s0 + $0xf0] sm:$0xff]
  %v2139 = vmul.f32 %v2123, %v1142
  %v2140 = vmul.f32 %v2124, %v1147
  %v2141 = vmul.f32 %v2125, %v1152
  %v2142 = vmul.f32 %v2126, %v1157
  %v2143 = vmul.f32 %v2127, %v1162
  %v2144 = vmul.f32 %v2128, %v1167
  %v2145 = vmul.f32 %v2129, %v1172
  %v2146 = vmul.f32 %v2130, %v1177
  %v2147 = vmul.f32 %v2131, %v1182
  %v2148 = vmul.f32 %v2132, %v1187
  %v2149 = vmul.f32 %v2133, %v1192
  %v2150 = vmul.f32 %v2134, %v1197
  %v2151 = vmul.f32 %v2135, %v1202
  %v2152 = vmul.f32 %v2136, %v1207
  %v2153 = vmul.f32 %v2137, %v1212
  %v2154 = vmul.f32 %v2138, %v1217
  %v2155 = vperm.slane %v2107, 0
  %v2156 = vmul.f32 %v2139, %v2155
  %v2157 = vmul.f32 %v2140, %v2155
  %v2158 = vmul.f32 %v2141, %v2155
  %v2159 = vmul.f32 %v2142, %v2155
  %v2160 = vmul.f32 %v2143, %v2155
  %v2161 = vmul.f32 %v2144, %v2155
  %v2162 = vmul.f32 %v2145, %v2155
  %v2163 = vmul.f32 %v2146, %v2155
  %v2164 = vmul.f32 %v2147, %v2155
  %v2165 = vmul.f32 %v2148, %v2155
  %v2166 = vmul.f32 %v2149, %v2155
  %v2167 = vmul.f32 %v2150, %v2155
  %v2168 = vmul.f32 %v2151, %v2155
  %v2169 = vmul.f32 %v2152, %v2155
  %v2170 = vmul.f32 %v2153, %v2155
  %v2171 = vmul.f32 %v2154, %v2155
  %2172 = vst [vmem:[%s3] sm:$0xff] %v2156
  %2173 = vst [vmem:[%s3 + $0x10] sm:$0xff] %v2157
  %2174 = vst [vmem:[%s3 + $0x20] sm:$0xff] %v2158
  %2175 = vst [vmem:[%s3 + $0x30] sm:$0xff] %v2159
  %2176 = vst [vmem:[%s3 + $0x40] sm:$0xff] %v2160
  %2177 = vst [vmem:[%s3 + $0x50] sm:$0xff] %v2161
  %2178 = vst [vmem:[%s3 + $0x60] sm:$0xff] %v2162
  %2179 = vst [vmem:[%s3 + $0x70] sm:$0xff] %v2163
  %2180 = vst [vmem:[%s3 + $0x80] sm:$0xff] %v2164
  %2181 = vst [vmem:[%s3 + $0x90] sm:$0xff] %v2165
  %2182 = vst [vmem:[%s3 + $0xa0] sm:$0xff] %v2166
  %2183 = vst [vmem:[%s3 + $0xb0] sm:$0xff] %v2167
  %2184 = vst [vmem:[%s3 + $0xc0] sm:$0xff] %v2168
  %2185 = vst [vmem:[%s3 + $0xd0] sm:$0xff] %v2169
  %2186 = vst [vmem:[%s3 + $0xe0] sm:$0xff] %v2170
  %2187 = vst [vmem:[%s3 + $0xf0] sm:$0xff] %v2171
  %v2188 = vld [vmem:[%s0 + $0x8] sm:$0xff]
  %v2189 = vld [vmem:[%s0 + $0x18] sm:$0xff]
  %v2190 = vld [vmem:[%s0 + $0x28] sm:$0xff]
  %v2191 = vld [vmem:[%s0 + $0x38] sm:$0xff]
  %v2192 = vld [vmem:[%s0 + $0x48] sm:$0xff]
  %v2193 = vld [vmem:[%s0 + $0x58] sm:$0xff]
  %v2194 = vld [vmem:[%s0 + $0x68] sm:$0xff]
  %v2195 = vld [vmem:[%s0 + $0x78] sm:$0xff]
  %v2196 = vld [vmem:[%s0 + $0x88] sm:$0xff]
  %v2197 = vld [vmem:[%s0 + $0x98] sm:$0xff]
  %v2198 = vld [vmem:[%s0 + $0xa8] sm:$0xff]
  %v2199 = vld [vmem:[%s0 + $0xb8] sm:$0xff]
  %v2200 = vld [vmem:[%s0 + $0xc8] sm:$0xff]
  %v2201 = vld [vmem:[%s0 + $0xd8] sm:$0xff]
  %v2202 = vld [vmem:[%s0 + $0xe8] sm:$0xff]
  %v2203 = vld [vmem:[%s0 + $0xf8] sm:$0xff]
  %v2204 = vmul.f32 %v2188, %v1142
  %v2205 = vmul.f32 %v2189, %v1147
  %v2206 = vmul.f32 %v2190, %v1152
  %v2207 = vmul.f32 %v2191, %v1157
  %v2208 = vmul.f32 %v2192, %v1162
  %v2209 = vmul.f32 %v2193, %v1167
  %v2210 = vmul.f32 %v2194, %v1172
  %v2211 = vmul.f32 %v2195, %v1177
  %v2212 = vmul.f32 %v2196, %v1182
  %v2213 = vmul.f32 %v2197, %v1187
  %v2214 = vmul.f32 %v2198, %v1192
  %v2215 = vmul.f32 %v2199, %v1197
  %v2216 = vmul.f32 %v2200, %v1202
  %v2217 = vmul.f32 %v2201, %v1207
  %v2218 = vmul.f32 %v2202, %v1212
  %v2219 = vmul.f32 %v2203, %v1217
  %v2220 = vperm.slane %v2122, 0
  %v2221 = vmul.f32 %v2204, %v2220
  %v2222 = vmul.f32 %v2205, %v2220
  %v2223 = vmul.f32 %v2206, %v2220
  %v2224 = vmul.f32 %v2207, %v2220
  %v2225 = vmul.f32 %v2208, %v2220
  %v2226 = vmul.f32 %v2209, %v2220
  %v2227 = vmul.f32 %v2210, %v2220
  %v2228 = vmul.f32 %v2211, %v2220
  %v2229 = vmul.f32 %v2212, %v2220
  %v2230 = vmul.f32 %v2213, %v2220
  %v2231 = vmul.f32 %v2214, %v2220
  %v2232 = vmul.f32 %v2215, %v2220
  %v2233 = vmul.f32 %v2216, %v2220
  %v2234 = vmul.f32 %v2217, %v2220
  %v2235 = vmul.f32 %v2218, %v2220
  %v2236 = vmul.f32 %v2219, %v2220
  %2237 = vst [vmem:[%s3 + $0x8] sm:$0xff] %v2221
  %2238 = vst [vmem:[%s3 + $0x18] sm:$0xff] %v2222
  %2239 = vst [vmem:[%s3 + $0x28] sm:$0xff] %v2223
  %2240 = vst [vmem:[%s3 + $0x38] sm:$0xff] %v2224
  %2241 = vst [vmem:[%s3 + $0x48] sm:$0xff] %v2225
  %2242 = vst [vmem:[%s3 + $0x58] sm:$0xff] %v2226
  %2243 = vst [vmem:[%s3 + $0x68] sm:$0xff] %v2227
  %2244 = vst [vmem:[%s3 + $0x78] sm:$0xff] %v2228
  %2245 = vst [vmem:[%s3 + $0x88] sm:$0xff] %v2229
  %2246 = vst [vmem:[%s3 + $0x98] sm:$0xff] %v2230
  %2247 = vst [vmem:[%s3 + $0xa8] sm:$0xff] %v2231
  %2248 = vst [vmem:[%s3 + $0xb8] sm:$0xff] %v2232
  %2249 = vst [vmem:[%s3 + $0xc8] sm:$0xff] %v2233
  %2250 = vst [vmem:[%s3 + $0xd8] sm:$0xff] %v2234
  %2251 = vst [vmem:[%s3 + $0xe8] sm:$0xff] %v2235
  %2252 = vst [vmem:[%s3 + $0xf8] sm:$0xff] %v2236
  %v2253 = vld [vmem:[%s274] sm:$0xff]
  %v2254 = vld [vmem:[%s274 + $0x10] sm:$0xff]
  %v2255 = vld [vmem:[%s274 + $0x20] sm:$0xff]
  %v2256 = vld [vmem:[%s274 + $0x30] sm:$0xff]
  %v2257 = vld [vmem:[%s274 + $0x40] sm:$0xff]
  %v2258 = vld [vmem:[%s274 + $0x50] sm:$0xff]
  %v2259 = vld [vmem:[%s274 + $0x60] sm:$0xff]
  %v2260 = vld [vmem:[%s274 + $0x70] sm:$0xff]
  %v2261 = vld [vmem:[%s274 + $0x80] sm:$0xff]
  %v2262 = vld [vmem:[%s274 + $0x90] sm:$0xff]
  %v2263 = vld [vmem:[%s274 + $0xa0] sm:$0xff]
  %v2264 = vld [vmem:[%s274 + $0xb0] sm:$0xff]
  %v2265 = vld [vmem:[%s274 + $0xc0] sm:$0xff]
  %v2266 = vld [vmem:[%s274 + $0xd0] sm:$0xff]
  %v2267 = vld [vmem:[%s274 + $0xe0] sm:$0xff]
  %v2268 = vld [vmem:[%s274 + $0xf0] sm:$0xff]
  %v2269 = vmul.f32 %v2253, %v1382
  %v2270 = vmul.f32 %v2254, %v1386
  %v2271 = vmul.f32 %v2255, %v1390
  %v2272 = vmul.f32 %v2256, %v1394
  %v2273 = vmul.f32 %v2257, %v1398
  %v2274 = vmul.f32 %v2258, %v1402
  %v2275 = vmul.f32 %v2259, %v1406
  %v2276 = vmul.f32 %v2260, %v1410
  %v2277 = vmul.f32 %v2261, %v1414
  %v2278 = vmul.f32 %v2262, %v1418
  %v2279 = vmul.f32 %v2263, %v1422
  %v2280 = vmul.f32 %v2264, %v1426
  %v2281 = vmul.f32 %v2265, %v1430
  %v2282 = vmul.f32 %v2266, %v1434
  %v2283 = vmul.f32 %v2267, %v1438
  %v2284 = vmul.f32 %v2268, %v1442
  %v2285 = vperm.slane %v2107, 1
  %v2286 = vmul.f32 %v2269, %v2285
  %v2287 = vmul.f32 %v2270, %v2285
  %v2288 = vmul.f32 %v2271, %v2285
  %v2289 = vmul.f32 %v2272, %v2285
  %v2290 = vmul.f32 %v2273, %v2285
  %v2291 = vmul.f32 %v2274, %v2285
  %v2292 = vmul.f32 %v2275, %v2285
  %v2293 = vmul.f32 %v2276, %v2285
  %v2294 = vmul.f32 %v2277, %v2285
  %v2295 = vmul.f32 %v2278, %v2285
  %v2296 = vmul.f32 %v2279, %v2285
  %v2297 = vmul.f32 %v2280, %v2285
  %v2298 = vmul.f32 %v2281, %v2285
  %v2299 = vmul.f32 %v2282, %v2285
  %v2300 = vmul.f32 %v2283, %v2285
  %v2301 = vmul.f32 %v2284, %v2285
  %s2302 = scalar_lea.vmem %s3, 256
  %2303 = vst [vmem:[%s2302] sm:$0xff] %v2286
  %2304 = vst [vmem:[%s2302 + $0x10] sm:$0xff] %v2287
  %2305 = vst [vmem:[%s2302 + $0x20] sm:$0xff] %v2288
  %2306 = vst [vmem:[%s2302 + $0x30] sm:$0xff] %v2289
  %2307 = vst [vmem:[%s2302 + $0x40] sm:$0xff] %v2290
  %2308 = vst [vmem:[%s2302 + $0x50] sm:$0xff] %v2291
  %2309 = vst [vmem:[%s2302 + $0x60] sm:$0xff] %v2292
  %2310 = vst [vmem:[%s2302 + $0x70] sm:$0xff] %v2293
  %2311 = vst [vmem:[%s2302 + $0x80] sm:$0xff] %v2294
  %2312 = vst [vmem:[%s2302 + $0x90] sm:$0xff] %v2295
  %2313 = vst [vmem:[%s2302 + $0xa0] sm:$0xff] %v2296
  %2314 = vst [vmem:[%s2302 + $0xb0] sm:$0xff] %v2297
  %2315 = vst [vmem:[%s2302 + $0xc0] sm:$0xff] %v2298
  %2316 = vst [vmem:[%s2302 + $0xd0] sm:$0xff] %v2299
  %2317 = vst [vmem:[%s2302 + $0xe0] sm:$0xff] %v2300
  %2318 = vst [vmem:[%s2302 + $0xf0] sm:$0xff] %v2301
  %v2319 = vld [vmem:[%s274 + $0x8] sm:$0xff]
  %v2320 = vld [vmem:[%s274 + $0x18] sm:$0xff]
  %v2321 = vld [vmem:[%s274 + $0x28] sm:$0xff]
  %v2322 = vld [vmem:[%s274 + $0x38] sm:$0xff]
  %v2323 = vld [vmem:[%s274 + $0x48] sm:$0xff]
  %v2324 = vld [vmem:[%s274 + $0x58] sm:$0xff]
  %v2325 = vld [vmem:[%s274 + $0x68] sm:$0xff]
  %v2326 = vld [vmem:[%s274 + $0x78] sm:$0xff]
  %v2327 = vld [vmem:[%s274 + $0x88] sm:$0xff]
  %v2328 = vld [vmem:[%s274 + $0x98] sm:$0xff]
  %v2329 = vld [vmem:[%s274 + $0xa8] sm:$0xff]
  %v2330 = vld [vmem:[%s274 + $0xb8] sm:$0xff]
  %v2331 = vld [vmem:[%s274 + $0xc8] sm:$0xff]
  %v2332 = vld [vmem:[%s274 + $0xd8] sm:$0xff]
  %v2333 = vld [vmem:[%s274 + $0xe8] sm:$0xff]
  %v2334 = vld [vmem:[%s274 + $0xf8] sm:$0xff]
  %v2335 = vmul.f32 %v2319, %v1382
  %v2336 = vmul.f32 %v2320, %v1386
  %v2337 = vmul.f32 %v2321, %v1390
  %v2338 = vmul.f32 %v2322, %v1394
  %v2339 = vmul.f32 %v2323, %v1398
  %v2340 = vmul.f32 %v2324, %v1402
  %v2341 = vmul.f32 %v2325, %v1406
  %v2342 = vmul.f32 %v2326, %v1410
  %v2343 = vmul.f32 %v2327, %v1414
  %v2344 = vmul.f32 %v2328, %v1418
  %v2345 = vmul.f32 %v2329, %v1422
  %v2346 = vmul.f32 %v2330, %v1426
  %v2347 = vmul.f32 %v2331, %v1430
  %v2348 = vmul.f32 %v2332, %v1434
  %v2349 = vmul.f32 %v2333, %v1438
  %v2350 = vmul.f32 %v2334, %v1442
  %v2351 = vperm.slane %v2122, 1
  %v2352 = vmul.f32 %v2335, %v2351
  %v2353 = vmul.f32 %v2336, %v2351
  %v2354 = vmul.f32 %v2337, %v2351
  %v2355 = vmul.f32 %v2338, %v2351
  %v2356 = vmul.f32 %v2339, %v2351
  %v2357 = vmul.f32 %v2340, %v2351
  %v2358 = vmul.f32 %v2341, %v2351
  %v2359 = vmul.f32 %v2342, %v2351
  %v2360 = vmul.f32 %v2343, %v2351
  %v2361 = vmul.f32 %v2344, %v2351
  %v2362 = vmul.f32 %v2345, %v2351
  %v2363 = vmul.f32 %v2346, %v2351
  %v2364 = vmul.f32 %v2347, %v2351
  %v2365 = vmul.f32 %v2348, %v2351
  %v2366 = vmul.f32 %v2349, %v2351
  %v2367 = vmul.f32 %v2350, %v2351
  %2368 = vst [vmem:[%s2302 + $0x8] sm:$0xff] %v2352
  %2369 = vst [vmem:[%s2302 + $0x18] sm:$0xff] %v2353
  %2370 = vst [vmem:[%s2302 + $0x28] sm:$0xff] %v2354
  %2371 = vst [vmem:[%s2302 + $0x38] sm:$0xff] %v2355
  %2372 = vst [vmem:[%s2302 + $0x48] sm:$0xff] %v2356
  %2373 = vst [vmem:[%s2302 + $0x58] sm:$0xff] %v2357
  %2374 = vst [vmem:[%s2302 + $0x68] sm:$0xff] %v2358
  %2375 = vst [vmem:[%s2302 + $0x78] sm:$0xff] %v2359
  %2376 = vst [vmem:[%s2302 + $0x88] sm:$0xff] %v2360
  %2377 = vst [vmem:[%s2302 + $0x98] sm:$0xff] %v2361
  %2378 = vst [vmem:[%s2302 + $0xa8] sm:$0xff] %v2362
  %2379 = vst [vmem:[%s2302 + $0xb8] sm:$0xff] %v2363
  %2380 = vst [vmem:[%s2302 + $0xc8] sm:$0xff] %v2364
  %2381 = vst [vmem:[%s2302 + $0xd8] sm:$0xff] %v2365
  %2382 = vst [vmem:[%s2302 + $0xe8] sm:$0xff] %v2366
  %2383 = vst [vmem:[%s2302 + $0xf8] sm:$0xff] %v2367
  // Predicated region
  $region14: #{_lambda_.1} parent=0 // pred_check
    _
  $region15: #{_lambda_.1} parent=0 // pred_check_branch
    %2385 = sbr.rel (0) target = $region17
  $region16: #{_lambda_.1} parent=0 // pred_region
    _
  $region17: #{_lambda_.1} parent=0 // pred_fallthru
    _
  // Predicated region
  $region18: #{_lambda_.1} parent=0 // pred_check
    _
  $region19: #{_lambda_.1} parent=0 // pred_check_branch
    %2387 = sbr.rel (0) target = $region21
  $region20: #{_lambda_.1} parent=0 // pred_region
    _
  $region21: #{_lambda_.1} parent=0 // pred_fallthru
    _

</llo_original>
